<compile_context>
chip_gen: v7x
topology: tpu7x:2x2x1
jax: 0.10.0
libtpu: 0.0.40
codegen_flags: <defaults>
</compile_context>

<pallas_src>
import math

import jax
import jax.numpy as jnp
from jax.experimental import pallas as pl
from jax.experimental.pallas import tpu as pltpu

_NEG_LOG_07 = -math.log(0.7)          # -log(0.7), the BCE value of the 0.7 clamp
_VMEM_LIMIT = 48 * 1024 * 1024        # > v5e(16)/v6e(32) scoped defaults, < v7x 64 MiB


# ---------------------------------------------------------------------------
# helpers
# ---------------------------------------------------------------------------
def _pick_block(n, cap):
    """Largest divisor of n that is a multiple of 8 and <= cap, else n itself
    (full dim is always a legal block)."""
    for d in range(min(n, cap), 0, -1):
        if n % d == 0 and d % 8 == 0:
            return d
    return n


_SINGLE_BUFFER_OK = None


def _single_buffer_supported():
    """Probe once whether pipeline_mode=pl.Buffered(1) is accepted."""
    global _SINGLE_BUFFER_OK
    if _SINGLE_BUFFER_OK is not None:
        return _SINGLE_BUFFER_OK

    def _probe(w_ref, x_ref, o_ref):
        o_ref[...] = x_ref[...] + w_ref[...]

    try:
        w = jnp.ones((8, 128), jnp.float32)
        x = jnp.zeros((16, 128), jnp.float32)
        out = pl.pallas_call(
            _probe,
            grid=(2,),
            in_specs=[pl.BlockSpec((8, 128), lambda i: (0, 0),
                                   pipeline_mode=pl.Buffered(1)),
                      pl.BlockSpec((8, 128), lambda i: (i, 0))],
            out_specs=pl.BlockSpec((8, 128), lambda i: (i, 0)),
            out_shape=jax.ShapeDtypeStruct((16, 128), jnp.float32),
        )(w, x)
        jax.block_until_ready(out)
        _SINGLE_BUFFER_OK = True
    except Exception:
        _SINGLE_BUFFER_OK = False
    return _SINGLE_BUFFER_OK


def _weight_spec(shape, single_buffer):
    """Grid-invariant (weight) BlockSpec; single-buffered when supported so
    v7x's 64 MiB/TC is not wasted double-buffering data that never changes."""
    if single_buffer:
        return pl.BlockSpec(shape, lambda i: (0, 0),
                            pipeline_mode=pl.Buffered(1))
    return pl.BlockSpec(shape, lambda i: (0, 0))


# ---------------------------------------------------------------------------
# BERT kernels (stand-in single-layer transformer encoder)
# ---------------------------------------------------------------------------
def _bert_block(ids, x, pos, wqkv, w1, b1, w2, b2):
    """One [NB, S, E] block; bf16 matmuls with f32 accumulation, f32 result.
    The 1/sqrt(E) score scale is pre-folded into the Q columns of wqkv."""
    NB, S, E = x.shape
    bf = jnp.bfloat16

    xb = x + pos[None, :, :]                                   # bf16 [NB,S,E]
    x2 = xb.reshape(NB * S, E)

    # fused QKV projection: one MXU push with N = 3E
    qkv2 = jnp.dot(x2, wqkv, preferred_element_type=jnp.float32)   # [NB*S,3E]
    q = qkv2[:, 0:E].reshape(NB, S, E).astype(bf)
    k = qkv2[:, E:2 * E].reshape(NB, S, E).astype(bf)
    v = qkv2[:, 2 * E:3 * E].reshape(NB, S, E).astype(bf)

    s = jnp.einsum('bqe,bke->bqk', q, k,
                   preferred_element_type=jnp.float32)             # [NB,S,S]
    key_mask = (ids > 0)[:, None, :]                               # [NB,1,S]
    s = jnp.where(key_mask, s, -1e9)
    s = s - jnp.max(s, axis=-1, keepdims=True)
    ex = jnp.exp(s)
    # approx reciprocal: forward-only use, ~1e-4 rel. error in attention probs
    p = (ex * pl.reciprocal(jnp.sum(ex, axis=-1, keepdims=True),
                            approx=True)).astype(bf)

    attn = jnp.einsum('bqk,bke->bqe', p, v,
                      preferred_element_type=jnp.float32)
    h = xb.astype(jnp.float32) + attn                              # residual

    h2 = h.reshape(NB * S, E).astype(bf)
    f = jnp.maximum(
        jnp.dot(h2, w1, preferred_element_type=jnp.float32) + b1, 0.0)
    f = jnp.dot(f.astype(bf), w2, preferred_element_type=jnp.float32) + b2
    return h + f.reshape(NB, S, E)                                 # f32


def bert_full_kernel(ids_ref, x_ref, pos_ref, wqkv_ref, w1_ref, b1_ref,
                     w2_ref, b2_ref, o_ref):
    out = _bert_block(ids_ref[...], x_ref[...], pos_ref[...], wqkv_ref[...],
                      w1_ref[...], b1_ref[...], w2_ref[...], b2_ref[...])
    o_ref[...] = out.astype(o_ref.dtype)                           # [NB,S,E]


def bert_last_kernel(ids_ref, x_ref, pos_ref, wqkv_ref, w1_ref, b1_ref,
                     w2_ref, b2_ref, o_ref):
    out = _bert_block(ids_ref[...], x_ref[...], pos_ref[...], wqkv_ref[...],
                      w1_ref[...], b1_ref[...], w2_ref[...], b2_ref[...])
    # last-token extraction via a masked sublane reduction (no squeeze relayout)
    S = out.shape[1]
    sel = jax.lax.broadcasted_iota(jnp.int32, out.shape, 1) == (S - 1)
    o_ref[...] = jnp.sum(jnp.where(sel, out, 0.0), axis=1).astype(o_ref.dtype)


def run_bert(ids, x, bert_params, last_only):
    """BERT over stacked behaviour sequences [NB, S]; full [NB,S,E] output or
    last-token-only [NB,E] output (5/6 of the HBM writeback removed)."""
    NB, S, E = x.shape
    pos, wqkv, w1, fb1, w2, fb2 = bert_params
    # 32-row batch blocks (mult. of 8) -> bigger MXU M, fewer grid steps;
    # re-derive the cap when E grows (v7x: keep block + weights under ~48 MiB).
    NBb = _pick_block(NB, 32)
    grid = (NB // NBb,)
    sb = _single_buffer_supported()

    if last_only:
        kernel = bert_last_kernel
        out_shape = jax.ShapeDtypeStruct((NB, E), jnp.bfloat16)
        out_spec = pl.BlockSpec((NBb, E), lambda i: (i, 0))
    else:
        kernel = bert_full_kernel
        out_shape = jax.ShapeDtypeStruct((NB, S, E), jnp.bfloat16)
        out_spec = pl.BlockSpec((NBb, S, E), lambda i: (i, 0, 0))

    return pl.pallas_call(
        kernel,
        grid=grid,
        in_specs=[
            pl.BlockSpec((NBb, S), lambda i: (i, 0)),
            pl.BlockSpec((NBb, S, E), lambda i: (i, 0, 0)),
            _weight_spec(pos.shape, sb),
            _weight_spec(wqkv.shape, sb),
            _weight_spec(w1.shape, sb),
            _weight_spec(fb1.shape, sb),
            _weight_spec(w2.shape, sb),
            _weight_spec(fb2.shape, sb),
        ],
        out_specs=out_spec,
        out_shape=out_shape,
        compiler_params=pltpu.CompilerParams(
            dimension_semantics=("parallel",),
            vmem_limit_bytes=_VMEM_LIMIT),
    )(ids, x, pos, wqkv, w1, fb1, w2, fb2)


# ---------------------------------------------------------------------------
# fc_user kernel (row-tiled grid over the batch axis, split W1)
# ---------------------------------------------------------------------------
def fc_user_kernel(item_ref, pv_ref, cart_ref, w1a_ref, w1b_ref, w1c_ref,
                   b1_ref, w2_ref, b2_ref, o_ref):
    # fc_user: Linear(3E, E) -> ReLU -> Linear(E, E), with W1 split so that the
    # pv/cart contribution (identical across S) is computed once per batch
    # element and broadcast-added -- no [B, S, 3E] tensor.
    Bb, S, E = item_ref.shape
    bf = jnp.bfloat16

    pc = (jnp.dot(pv_ref[...], w1b_ref[...],
                  preferred_element_type=jnp.float32)
          + jnp.dot(cart_ref[...], w1c_ref[...],
                    preferred_element_type=jnp.float32)
          + b1_ref[...])                                            # [Bb,E]

    if S == 1:
        # eval path (single position): squeeze the unit axis via a reduction.
        item2 = jnp.sum(item_ref[...].astype(jnp.float32), axis=1).astype(bf)
        h = jnp.dot(item2, w1a_ref[...], preferred_element_type=jnp.float32)
        h = jnp.maximum(h + pc, 0.0).astype(bf)
        o_ref[...] = (jnp.dot(h, w2_ref[...],
                              preferred_element_type=jnp.float32)
                      + b2_ref[...]).astype(o_ref.dtype)
        return

    h = jnp.dot(item_ref[...].reshape(Bb * S, E), w1a_ref[...],
                preferred_element_type=jnp.float32).reshape(Bb, S, E)
    h = jnp.maximum(h + pc[:, None, :], 0.0).astype(bf)
    o_ref[...] = (jnp.dot(h.reshape(Bb * S, E), w2_ref[...],
                          preferred_element_type=jnp.float32)
                  + b2_ref[...]).astype(o_ref.dtype)                # [Bb*S,E]


def run_fc_user(item, pv_last, cart_last, w1a, w1b, w1c, fb1, w2, fb2):
    B, S, E = item.shape
    sb = _single_buffer_supported()
    Bb = _pick_block(B, max(8, 512 // max(S, 1)))   # aim ~512 output rows/block
    grid = (B // Bb,)
    return pl.pallas_call(
        fc_user_kernel,
        grid=grid,
        in_specs=[
            pl.BlockSpec((Bb, S, E), lambda i: (i, 0, 0)),
            pl.BlockSpec((Bb, E), lambda i: (i, 0)),
            pl.BlockSpec((Bb, E), lambda i: (i, 0)),
            _weight_spec(w1a.shape, sb),
            _weight_spec(w1b.shape, sb),
            _weight_spec(w1c.shape, sb),
            _weight_spec(fb1.shape, sb),
            _weight_spec(w2.shape, sb),
            _weight_spec(fb2.shape, sb),
        ],
        out_specs=pl.BlockSpec((Bb * S, E), lambda i: (i, 0)),
        out_shape=jax.ShapeDtypeStruct((B * S, E), jnp.bfloat16),
        compiler_params=pltpu.CompilerParams(
            dimension_semantics=("parallel",),
            vmem_limit_bytes=_VMEM_LIMIT),
    )(item, pv_last, cart_last, w1a, w1b, w1c, fb1, w2, fb2)


# ---------------------------------------------------------------------------
# fused fc2 + contrastive loss + inner-triple loss kernel
# ---------------------------------------------------------------------------
def fc2_loss_kernel(stk_ref, w_ref, b_ref, uid_col_ref, uid_row_ref,
                    row_w_ref, cart_w_ref, o_ref):
    # stk: [5B, E] = concat(b1_emb, b2_emb, buy_emb(fav), click_emb(pv_last),
    #                       cart_emb(cart_last)).  One launch, one fc2 DMA,
    #                       ONE merged [5B,E] x [E,E] MXU matmul.
    KB, E = stk_ref.shape
    B = KB // 5

    t = (jnp.dot(stk_ref[...], w_ref[...],
                 preferred_element_type=jnp.float32) + b_ref[...])  # [5B,E]
    b1_t = t[0 * B:1 * B]
    b2_t = t[1 * B:2 * B]
    buy_t = t[2 * B:3 * B]
    click_t = t[3 * B:4 * B]
    cart_t = t[4 * B:5 * B]

    def neg_log_sigmoid(z):
        # -log(sigmoid(z)) = softplus(-z), numerically stable (no log(0))
        return jnp.maximum(-z, 0.0) + jnp.log(1.0 + jnp.exp(-jnp.abs(z)))

    # ---- constras_behavior_seq: BCE(sigmoid(diag - scores), 1) over the
    #      (have_constra row) x (different-user pair) mask ----
    scores = jnp.einsum('ie,je->ij', b1_t, b2_t,
                        preferred_element_type=jnp.float32)         # [B,B]
    self_scores = jnp.sum(b1_t * b2_t, axis=1, keepdims=True)       # [B,1]
    nll = neg_log_sigmoid(self_scores - scores)
    pair_w = (uid_col_ref[...] != uid_row_ref[...]).astype(jnp.float32)  # [B,B]
    w_ce = row_w_ref[...] * pair_w
    ce_num = jnp.sum(nll * w_ce, axis=(0, 1), keepdims=True)
    ce_den = jnp.maximum(jnp.sum(w_ce, axis=(0, 1), keepdims=True), 1.0)
    ce = ce_num / ce_den                                            # (1,1)

    # ---- inner_triple: p = clamp(sigmoid(b - a), max=0.7); BCE(p, 1) over
    #      the have_cart mask.  -log(min(sigmoid(z),0.7)) =
    #      max(softplus(-z), -log(0.7)) ----
    a = jnp.sum(buy_t * cart_t, axis=1, keepdims=True)              # [B,1]
    bsc = jnp.sum(buy_t * click_t, axis=1, keepdims=True)           # [B,1]
    nll2 = jnp.maximum(neg_log_sigmoid(bsc - a), _NEG_LOG_07)
    in_num = jnp.sum(nll2 * cart_w_ref[...], axis=(0, 1), keepdims=True)
    in_den = jnp.maximum(jnp.sum(cart_w_ref[...], axis=(0, 1), keepdims=True),
                         1.0)
    inner = in_num / in_den                                         # (1,1)

    # lane-dense packed output: lane 0 = ce_loss, lane 1 = inner_loss
    lane = jax.lax.broadcasted_iota(jnp.int32, o_ref.shape, 1)
    o_ref[...] = jnp.where(lane == 0, ce, jnp.where(lane == 1, inner, 0.0))


def run_fc2_losses(stk, w_fc2, b_fc2, uid_col, uid_row, row_w, cart_w):
    return pl.pallas_call(
        fc2_loss_kernel,
        out_shape=jax.ShapeDtypeStruct((1, 128), jnp.float32),
        compiler_params=pltpu.CompilerParams(vmem_limit_bytes=_VMEM_LIMIT),
    )(stk, w_fc2, b_fc2, uid_col, uid_row, row_w, cart_w)


# ---------------------------------------------------------------------------
# deterministic parameter initialisation (bf16 weights, f32 biases)
# ---------------------------------------------------------------------------
def _init_linear(key, fan_in, fan_out):
    kw, kb = jax.random.split(key)
    bound = 1.0 / math.sqrt(float(fan_in))
    w = jax.random.uniform(kw, (fan_in, fan_out), jnp.float32,
                           -bound, bound).astype(jnp.bfloat16)
    b = jax.random.uniform(kb, (1, fan_out), jnp.float32, -bound, bound)
    return w, b


def init_params(key, vocab, seq_len, emb):
    ks = jax.random.split(key, 10)
    emb_table = (jax.random.normal(ks[0], (vocab, emb), jnp.float32)
                 * 0.02).astype(jnp.bfloat16)
    pos = (jax.random.normal(ks[1], (seq_len, emb), jnp.float32)
           * 0.02).astype(jnp.bfloat16)
    wqkv = jax.random.normal(ks[2], (emb, 3 * emb), jnp.float32) * (emb ** -0.5)
    # fold the 1/sqrt(E) attention scale into the Q columns (free at runtime)
    wqkv = wqkv.at[:, :emb].multiply(1.0 / math.sqrt(float(emb)))
    wqkv = wqkv.astype(jnp.bfloat16)
    w1, b1 = _init_linear(ks[3], emb, 4 * emb)
    w2, b2 = _init_linear(ks[4], 4 * emb, emb)
    fc_user = _init_linear(ks[5], 3 * emb, emb) + _init_linear(ks[6], emb, emb)
    fc2 = _init_linear(ks[7], emb, emb)
    # NOTE: RNN/GRU, fc_item, fc3, self.weight are defined in __init__ but
    # never used in forward(), so they are intentionally omitted.
    return dict(emb=emb_table,
                bert=(pos, wqkv, w1, b1, w2, b2),
                fc_user=fc_user,
                fc2=fc2)


# ---------------------------------------------------------------------------
# SequenceLayer.forward (is_eval branch supported; eval kept for fidelity)
# ---------------------------------------------------------------------------
def sequence_layer_forward(params, batch, is_eval=False):
    (user_id, masked_item_seq, pv_item_seq, cart_item_seq, fav_item_seq,
     pos, neg, b1_seq, b2_seq, b3_seq, have_cart, sampled_click,
     have_constra) = batch

    E = params['emb'].shape[1]
    B, S = masked_item_seq.shape
    token = lambda ids: jnp.take(params['emb'], ids, axis=0)     # glue gather

    # TODO(synk): data-dependent output shape; fine eagerly, not jit-able.
    sampled_click = sampled_click[sampled_click != -1]
    sampled_click_emb = token(sampled_click).reshape(-1, E)

    # ---- fused BERT: full [B,S,E] only for masked_item_seq; the five
    #      sequences read only at position -1 use the last-token kernel -------
    bert_full = run_bert(masked_item_seq, token(masked_item_seq),
                         params['bert'], last_only=False)           # [B,S,E]

    ids5 = jnp.concatenate([pv_item_seq, cart_item_seq, b1_seq, b2_seq,
                            fav_item_seq], axis=0)                  # [5B,S]
    last5 = run_bert(ids5, token(ids5), params['bert'],
                     last_only=True)                                # [5B,E]
    pv_last = last5[0 * B:1 * B]
    cart_last = last5[1 * B:2 * B]
    b1_emb = last5[2 * B:3 * B]
    b2_emb = last5[3 * B:4 * B]
    buy_emb = last5[4 * B:5 * B]                                    # fav seq

    # ---- fc_user with split W1 (no [B,S,3E] materialisation) --------------
    fw1, fb1, fw2, fb2 = params['fc_user']
    w1a, w1b, w1c = fw1[0:E], fw1[E:2 * E], fw1[2 * E:3 * E]
    if not is_eval:
        x = run_fc_user(bert_full, pv_last, cart_last,
                        w1a, w1b, w1c, fb1, fw2, fb2)               # [B*S,E]
    else:
        x = run_fc_user(bert_full[:, -1:, :], pv_last, cart_last,
                        w1a, w1b, w1c, fb1, fw2, fb2)               # [B,E]
    pos_e = token(pos).reshape(-1, E)
    neg_e = token(neg).reshape(-1, E)

    # ---- fused fc2 + constras_behavior_seq + inner_triple ------------------
    stk = jnp.concatenate([b1_emb, b2_emb, buy_emb, pv_last, cart_last],
                          axis=0)                                   # [5B,E]
    uid_col = user_id.astype(jnp.int32).reshape(B, 1)
    uid_row = user_id.astype(jnp.int32).reshape(1, B)
    row_w = (have_constra[:, 0] != 0).astype(jnp.float32)[:, None]  # [B,1]
    cart_w = (have_cart[:, 0] == 1).astype(jnp.float32)[:, None]    # [B,1]
    w_fc2, b_fc2 = params['fc2']
    losses = run_fc2_losses(stk, w_fc2, b_fc2, uid_col, uid_row,
                            row_w, cart_w)                          # (1,128)
    ce_loss = losses[0, 0]
    inner_loss = losses[0, 1]

    buy_click_emb = (buy_emb, pv_last)
    return x, pos_e, neg_e, inner_loss, ce_loss, buy_click_emb, sampled_click_emb


# ---------------------------------------------------------------------------
# main
# ---------------------------------------------------------------------------
if __name__ == "__main__":
    B, S, E, V = 8, 8, 128, 64   # batch, seq_len, embedding_size, vocab
    root = jax.random.PRNGKey(0)
    kparam, kdata = jax.random.split(root)
    params = init_params(kparam, V, S, E)

    dk = jax.random.split(kdata, 9)

    def seq_ids(k):
        ids = jax.random.randint(k, (B, S), 1, V, dtype=jnp.int32)
        return ids.at[:, :2].set(0)        # left-padding, id 0 == pad

    masked_item_seq = seq_ids(dk[0])
    pv_item_seq = seq_ids(dk[1])
    cart_item_seq = seq_ids(dk[2])
    fav_item_seq = seq_ids(dk[3])
    b1 = seq_ids(dk[4])
    b2 = seq_ids(dk[5])
    b3 = seq_ids(dk[6])
    pos = jax.random.randint(dk[7], (B, S), 1, V, dtype=jnp.int32)
    neg = jax.random.randint(dk[8], (B, S), 1, V, dtype=jnp.int32)
    user_id = jnp.array([1, 2, 3, 1, 4, 2, 5, 6], dtype=jnp.int32)
    have_cart = jnp.array([[1], [0], [1], [1], [0], [1], [1], [0]],
                          dtype=jnp.int32)
    have_constra = jnp.array([[1], [1], [0], [1], [1], [0], [1], [1]],
                             dtype=jnp.int32)
    sampled_click = jnp.array([3, 7, 11, 5, -1, -1], dtype=jnp.int32)

    batch = (user_id, masked_item_seq, pv_item_seq, cart_item_seq, fav_item_seq,
             pos, neg, b1, b2, b3, have_cart, sampled_click, have_constra)

    out = sequence_layer_forward(params, batch, is_eval=False)
    out = jax.block_until_ready(out)
    x, pos_e, neg_e, inner_loss, ce_loss, buy_click_emb, sampled_click_emb = out

    assert x.shape == (B * S, E)
    assert pos_e.shape == (B * S, E) and neg_e.shape == (B * S, E)
    assert buy_click_emb[0].shape == (B, E) and buy_click_emb[1].shape == (B, E)
    assert bool(jnp.isfinite(inner_loss)) and bool(jnp.isfinite(ce_loss))
    print("KERNEL_OK")
</pallas_src>

<mosaic_0001>
module attributes {stable_mosaic.version = 11 : i64} {
  func.func @_probe(%arg0: i32, %arg1: memref<8x128xf32, #tpu.memory_space<vmem>>, %arg2: memref<8x128xf32, #tpu.memory_space<vmem>>, %arg3: memref<8x128xf32, #tpu.memory_space<vmem>>) attributes {dimension_semantics = [#tpu.dimension_semantics<arbitrary>], iteration_bounds = array<i64: 2>, scalar_prefetch = 0 : i64, scratch_operands = 0 : i64, tpu.core_type = #tpu.core_type<tc>, window_params = [{pipeline_mode = #tpu.pipeline_mode<synchronous>, transform_indices = @transform_0, window_bounds = array<i64: 8, 128>}, {transform_indices = @transform_1, window_bounds = array<i64: 8, 128>}, {transform_indices = @transform_2, window_bounds = array<i64: 8, 128>}]} {
    %c0 = arith.constant 0 : index
    %c0_0 = arith.constant 0 : index
    %0 = vector.load %arg2[%c0, %c0_0] : memref<8x128xf32, #tpu.memory_space<vmem>>, vector<8x128xf32>
    %c0_1 = arith.constant 0 : index
    %c0_2 = arith.constant 0 : index
    %1 = vector.load %arg1[%c0_1, %c0_2] : memref<8x128xf32, #tpu.memory_space<vmem>>, vector<8x128xf32>
    %2 = arith.addf %0, %1 : vector<8x128xf32>
    %c0_3 = arith.constant 0 : index
    %c0_4 = arith.constant 0 : index
    %3 = vector.load %arg3[%c0_3, %c0_4] : memref<8x128xf32, #tpu.memory_space<vmem>>, vector<8x128xf32>
    tpu.vector_store %arg3[%c0_3, %c0_4], %2 {strides = array<i32>} : memref<8x128xf32, #tpu.memory_space<vmem>>, vector<8x128xf32>,
    return
  }
  func.func @transform_0(%arg0: i32) -> (i32, i32) {
    %c0_i32 = arith.constant 0 : i32
    %c0_i32_0 = arith.constant 0 : i32
    %c0_i32_1 = arith.constant 0 : i32
    return %c0_i32, %c0_i32_0 : i32, i32
  }
  func.func @transform_1(%arg0: i32) -> (i32, i32) {
    %c0_i32 = arith.constant 0 : i32
    %c0_i32_0 = arith.constant 0 : i32
    return %arg0, %c0_i32 : i32, i32
  }
  func.func @transform_2(%arg0: i32) -> (i32, i32) {
    %c0_i32 = arith.constant 0 : i32
    %c0_i32_0 = arith.constant 0 : i32
    return %arg0, %c0_i32 : i32, i32
  }
}

module attributes {stable_mosaic.version = 11 : i64} {
  func.func @bert_full_kernel(%arg0: i32, %arg1: memref<8x8xi32, #tpu.memory_space<vmem>>, %arg2: memref<8x8x128xbf16, #tpu.memory_space<vmem>>, %arg3: memref<8x128xbf16, #tpu.memory_space<vmem>>, %arg4: memref<128x384xbf16, #tpu.memory_space<vmem>>, %arg5: memref<128x512xbf16, #tpu.memory_space<vmem>>, %arg6: memref<1x512xf32, #tpu.memory_space<vmem>>, %arg7: memref<512x128xbf16, #tpu.memory_space<vmem>>, %arg8: memref<1x128xf32, #tpu.memory_space<vmem>>, %arg9: memref<8x8x128xbf16, #tpu.memory_space<vmem>>) attributes {dimension_semantics = [#tpu.dimension_semantics<parallel>], iteration_bounds = array<i64: 1>, scalar_prefetch = 0 : i64, scratch_operands = 0 : i64, tpu.core_type = #tpu.core_type<tc>, window_params = [{transform_indices = @transform_0, window_bounds = array<i64: 8, 8>}, {transform_indices = @transform_1, window_bounds = array<i64: 8, 8, 128>}, {pipeline_mode = #tpu.pipeline_mode<synchronous>, transform_indices = @transform_2, window_bounds = array<i64: 8, 128>}, {pipeline_mode = #tpu.pipeline_mode<synchronous>, transform_indices = @transform_3, window_bounds = array<i64: 128, 384>}, {pipeline_mode = #tpu.pipeline_mode<synchronous>, transform_indices = @transform_4, window_bounds = array<i64: 128, 512>}, {pipeline_mode = #tpu.pipeline_mode<synchronous>, transform_indices = @transform_5, window_bounds = array<i64: 1, 512>}, {pipeline_mode = #tpu.pipeline_mode<synchronous>, transform_indices = @transform_6, window_bounds = array<i64: 512, 128>}, {pipeline_mode = #tpu.pipeline_mode<synchronous>, transform_indices = @transform_7, window_bounds = array<i64: 1, 128>}, {transform_indices = @transform_8, window_bounds = array<i64: 8, 8, 128>}]} {
    %c0 = arith.constant 0 : index
    %c0_0 = arith.constant 0 : index
    %0 = vector.load %arg1[%c0, %c0_0] : memref<8x8xi32, #tpu.memory_space<vmem>>, vector<8x8xi32>
    %c0_1 = arith.constant 0 : index
    %c0_2 = arith.constant 0 : index
    %c0_3 = arith.constant 0 : index
    %1 = vector.load %arg2[%c0_1, %c0_2, %c0_3] : memref<8x8x128xbf16, #tpu.memory_space<vmem>>, vector<8x8x128xbf16>
    %c0_4 = arith.constant 0 : index
    %c0_5 = arith.constant 0 : index
    %2 = vector.load %arg3[%c0_4, %c0_5] : memref<8x128xbf16, #tpu.memory_space<vmem>>, vector<8x128xbf16>
    %c0_6 = arith.constant 0 : index
    %c0_7 = arith.constant 0 : index
    %3 = vector.load %arg4[%c0_6, %c0_7] : memref<128x384xbf16, #tpu.memory_space<vmem>>, vector<128x384xbf16>
    %c0_8 = arith.constant 0 : index
    %c0_9 = arith.constant 0 : index
    %4 = vector.load %arg5[%c0_8, %c0_9] : memref<128x512xbf16, #tpu.memory_space<vmem>>, vector<128x512xbf16>
    %c0_10 = arith.constant 0 : index
    %c0_11 = arith.constant 0 : index
    %5 = vector.load %arg6[%c0_10, %c0_11] : memref<1x512xf32, #tpu.memory_space<vmem>>, vector<1x512xf32>
    %c0_12 = arith.constant 0 : index
    %c0_13 = arith.constant 0 : index
    %6 = vector.load %arg7[%c0_12, %c0_13] : memref<512x128xbf16, #tpu.memory_space<vmem>>, vector<512x128xbf16>
    %c0_14 = arith.constant 0 : index
    %c0_15 = arith.constant 0 : index
    %7 = vector.load %arg8[%c0_14, %c0_15] : memref<1x128xf32, #tpu.memory_space<vmem>>, vector<1x128xf32>
    %8 = vector.shape_cast %2 : vector<8x128xbf16> to vector<1x8x128xbf16>
    %9 = vector.broadcast %8 : vector<1x8x128xbf16> to vector<8x8x128xbf16>
    %10 = arith.addf %1, %9 : vector<8x8x128xbf16>
    %11 = vector.shape_cast %10 : vector<8x8x128xbf16> to vector<64x128xbf16>
    %cst = arith.constant dense<0.000000e+00> : vector<64x384xf32>
    %12 = tpu.matmul %11, %3, %cst {dimension_numbers = #tpu.dot_dimension_numbers<[1], [0], [0], [1], [0, 0, 1, 1], [], []>} : vector<64x128xbf16>, vector<128x384xbf16>, vector<64x384xf32> -> vector<64x384xf32>
    %13 = vector.extract_strided_slice %12 {offsets = [0, 0], sizes = [64, 128], strides = [1, 1]} : vector<64x384xf32> to vector<64x128xf32>
    %14 = vector.shape_cast %13 : vector<64x128xf32> to vector<8x8x128xf32>
    %15 = arith.truncf %14 : vector<8x8x128xf32> to vector<8x8x128xbf16>
    %16 = vector.extract_strided_slice %12 {offsets = [0, 128], sizes = [64, 128], strides = [1, 1]} : vector<64x384xf32> to vector<64x128xf32>
    %17 = vector.shape_cast %16 : vector<64x128xf32> to vector<8x8x128xf32>
    %18 = arith.truncf %17 : vector<8x8x128xf32> to vector<8x8x128xbf16>
    %19 = vector.extract_strided_slice %12 {offsets = [0, 256], sizes = [64, 128], strides = [1, 1]} : vector<64x384xf32> to vector<64x128xf32>
    %20 = vector.shape_cast %19 : vector<64x128xf32> to vector<8x8x128xf32>
    %21 = arith.truncf %20 : vector<8x8x128xf32> to vector<8x8x128xbf16>
    "tpu.trace_start"() <{level = 10 : i32, message = "bqe,bke->bqk"}> : () -> ()
    %cst_16 = arith.constant dense<0.000000e+00> : vector<8x8x8xf32>
    %22 = tpu.matmul %15, %18, %cst_16 {dimension_numbers = #tpu.dot_dimension_numbers<[2], [2], [1], [1], [0, 0, 0, 1, 1, 1], [0], [0]>} : vector<8x8x128xbf16>, vector<8x8x128xbf16>, vector<8x8x8xf32> -> vector<8x8x8xf32>
    %c0_i32 = arith.constant 0 : i32
    "tpu.trace_stop"() : () -> ()
    %23 = vector.broadcast %c0_i32 : i32 to vector<8x8xi32>
    %24 = arith.cmpi sgt, %0, %23 : vector<8x8xi32>
    %25 = vector.shape_cast %24 : vector<8x8xi1> to vector<8x1x8xi1>
    %cst_17 = arith.constant -1.000000e+09 : f32
    %26 = vector.shape_cast %25 : vector<8x1x8xi1> to vector<8x1x8xi1>
    %27 = vector.broadcast %26 : vector<8x1x8xi1> to vector<8x8x8xi1>
    %28 = vector.broadcast %cst_17 : f32 to vector<8x8x8xf32>
    %29 = arith.select %27, %22, %28 : vector<8x8x8xi1>, vector<8x8x8xf32>
    %cst_18 = arith.constant dense<0xFF800000> : vector<8x8xf32>
    %30 = vector.multi_reduction <maximumf>, %29, %cst_18 [2] : vector<8x8x8xf32> to vector<8x8xf32>
    %31 = vector.shape_cast %30 : vector<8x8xf32> to vector<8x8x1xf32>
    %32 = vector.broadcast %31 : vector<8x8x1xf32> to vector<8x8x8xf32>
    %33 = arith.subf %29, %32 : vector<8x8x8xf32>
    %34 = math.exp %33 : vector<8x8x8xf32>
    %cst_19 = arith.constant dense<0.000000e+00> : vector<8x8xf32>
    %35 = vector.multi_reduction <add>, %34, %cst_19 [2] : vector<8x8x8xf32> to vector<8x8xf32>
    %36 = vector.shape_cast %35 : vector<8x8xf32> to vector<8x8x1xf32>
    %37 = tpu.reciprocal %36 {approx = true} : vector<8x8x1xf32> -> vector<8x8x1xf32>
    %38 = vector.broadcast %37 : vector<8x8x1xf32> to vector<8x8x8xf32>
    %39 = arith.mulf %34, %38 : vector<8x8x8xf32>
    %40 = arith.truncf %39 : vector<8x8x8xf32> to vector<8x8x8xbf16>
    "tpu.trace_start"() <{level = 10 : i32, message = "bqk,bke->bqe"}> : () -> ()
    %cst_20 = arith.constant dense<0.000000e+00> : vector<8x8x128xf32>
    %41 = tpu.matmul %40, %21, %cst_20 {dimension_numbers = #tpu.dot_dimension_numbers<[2], [1], [1], [2], [0, 0, 0, 1, 1, 2], [0], [0]>} : vector<8x8x8xbf16>, vector<8x8x128xbf16>, vector<8x8x128xf32> -> vector<8x8x128xf32>
    "tpu.trace_stop"() : () -> ()
    %42 = arith.extf %10 : vector<8x8x128xbf16> to vector<8x8x128xf32>
    %43 = arith.addf %42, %41 : vector<8x8x128xf32>
    %44 = vector.shape_cast %43 : vector<8x8x128xf32> to vector<64x128xf32>
    %45 = arith.truncf %44 : vector<64x128xf32> to vector<64x128xbf16>
    %cst_21 = arith.constant dense<0.000000e+00> : vector<64x512xf32>
    %46 = tpu.matmul %45, %4, %cst_21 {dimension_numbers = #tpu.dot_dimension_numbers<[1], [0], [0], [1], [0, 0, 1, 1], [], []>} : vector<64x128xbf16>, vector<128x512xbf16>, vector<64x512xf32> -> vector<64x512xf32>
    %47 = vector.broadcast %5 : vector<1x512xf32> to vector<64x512xf32>
    %48 = arith.addf %46, %47 : vector<64x512xf32>
    %cst_22 = arith.constant 0.000000e+00 : f32
    %49 = vector.broadcast %cst_22 : f32 to vector<64x512xf32>
    %50 = arith.maximumf %48, %49 : vector<64x512xf32>
    %51 = arith.truncf %50 : vector<64x512xf32> to vector<64x512xbf16>
    %cst_23 = arith.constant dense<0.000000e+00> : vector<64x128xf32>
    %52 = tpu.matmul %51, %6, %cst_23 {dimension_numbers = #tpu.dot_dimension_numbers<[1], [0], [0], [1], [0, 0, 1, 1], [], []>} : vector<64x512xbf16>, vector<512x128xbf16>, vector<64x128xf32> -> vector<64x128xf32>
    %53 = vector.broadcast %7 : vector<1x128xf32> to vector<64x128xf32>
    %54 = arith.addf %52, %53 : vector<64x128xf32>
    %55 = vector.shape_cast %54 : vector<64x128xf32> to vector<8x8x128xf32>
    %56 = arith.addf %43, %55 : vector<8x8x128xf32>
    %57 = arith.truncf %56 : vector<8x8x128xf32> to vector<8x8x128xbf16>
    %c0_24 = arith.constant 0 : index
    %c0_25 = arith.constant 0 : index
    %c0_26 = arith.constant 0 : index
    %58 = vector.load %arg9[%c0_24, %c0_25, %c0_26] : memref<8x8x128xbf16, #tpu.memory_space<vmem>>, vector<8x8x128xbf16>
    tpu.vector_store %arg9[%c0_24, %c0_25, %c0_26], %57 {strides = array<i32>} : memref<8x8x128xbf16, #tpu.memory_space<vmem>>, vector<8x8x128xbf16>,
    return
  }
  func.func @transform_0(%arg0: i32) -> (i32, i32) {
    %c0_i32 = arith.constant 0 : i32
    %c0_i32_0 = arith.constant 0 : i32
    return %arg0, %c0_i32 : i32, i32
  }
  func.func @transform_1(%arg0: i32) -> (i32, i32, i32) {
    %c0_i32 = arith.constant 0 : i32
    %c0_i32_0 = arith.constant 0 : i32
    %c0_i32_1 = arith.constant 0 : i32
    return %arg0, %c0_i32, %c0_i32_0 : i32, i32, i32
  }
  func.func @transform_2(%arg0: i32) -> (i32, i32) {
    %c0_i32 = arith.constant 0 : i32
    %c0_i32_0 = arith.constant 0 : i32
    %c0_i32_1 = arith.constant 0 : i32
    return %c0_i32, %c0_i32_0 : i32, i32
  }
  func.func @transform_3(%arg0: i32) -> (i32, i32) {
    %c0_i32 = arith.constant 0 : i32
    %c0_i32_0 = arith.constant 0 : i32
    %c0_i32_1 = arith.constant 0 : i32
    return %c0_i32, %c0_i32_0 : i32, i32
  }
  func.func @transform_4(%arg0: i32) -> (i32, i32) {
    %c0_i32 = arith.constant 0 : i32
    %c0_i32_0 = arith.constant 0 : i32
    %c0_i32_1 = arith.constant 0 : i32
    return %c0_i32, %c0_i32_0 : i32, i32
  }
  func.func @transform_5(%arg0: i32) -> (i32, i32) {
    %c0_i32 = arith.constant 0 : i32
    %c0_i32_0 = arith.constant 0 : i32
    %c0_i32_1 = arith.constant 0 : i32
    return %c0_i32, %c0_i32_0 : i32, i32
  }
  func.func @transform_6(%arg0: i32) -> (i32, i32) {
    %c0_i32 = arith.constant 0 : i32
    %c0_i32_0 = arith.constant 0 : i32
    %c0_i32_1 = arith.constant 0 : i32
    return %c0_i32, %c0_i32_0 : i32, i32
  }
  func.func @transform_7(%arg0: i32) -> (i32, i32) {
    %c0_i32 = arith.constant 0 : i32
    %c0_i32_0 = arith.constant 0 : i32
    %c0_i32_1 = arith.constant 0 : i32
    return %c0_i32, %c0_i32_0 : i32, i32
  }
  func.func @transform_8(%arg0: i32) -> (i32, i32, i32) {
    %c0_i32 = arith.constant 0 : i32
    %c0_i32_0 = arith.constant 0 : i32
    %c0_i32_1 = arith.constant 0 : i32
    return %arg0, %c0_i32, %c0_i32_0 : i32, i32, i32
  }
}

</mosaic_0001>

<llo_original>
// kernel: tpu_custom_call.1
$region0: #{tpu_custom_call.1}
  #allocation0 [shape = 'u32[]', space=smem, size = 0x4, offset = 0x4, fixed_abs, tag = 'smem constant byte address 0x4 - core index']
  #allocation1 [shape = 'u32[144,128]{1,0:T(1,128)}', space=vmem, size = 0x12000, scoped, tag = 'internal scratch']
  %s0 = inlined_call_operand.hbm [shape: f32[8,128], index: 0, kind: input, shape index: {}]
  %s1 = inlined_call_operand.hbm [shape: f32[16,128], index: 1, kind: input, shape index: {}]
  %s2 = inlined_call_operand.hbm [shape: f32[16,128], index: 2, kind: output, shape index: {}]
  %s3 = sld [smem:[#allocation0]]
  $region49: #{tpu_custom_call.1} parent=0
    _
  %s5 = ssub.s32 1, %s3
  %s6 = scalar_select 0, %s5, %s3
  $region1: #{tpu_custom_call.1} parent=0
    #allocation2 [shape = 'u8[4096]{0}', space=vmem, size = 0x1000, scoped, tag = 'input window, operand 0, single buffered']
    #allocation3 [shape = 's32[2]{0}', space=sflag, size = 0x8, scoped, tag = 'scoped memory for tpu_custom_call.1']
    #allocation4 [shape = 's32[2]{0}', space=sflag, size = 0x8, scoped, tag = 'scoped memory for tpu_custom_call.1']
    #allocation5 [shape = 'u8[8192]{0}', space=vmem, size = 0x2000, scoped, tag = 'input window, operand 1']
    #allocation6 [shape = 's32[2]{0}', space=sflag, size = 0x8, scoped, tag = 'scoped memory for tpu_custom_call.1']
    #allocation7 [shape = 'u8[8192]{0}', space=vmem, size = 0x2000, scoped, tag = 'output window, operand 0']
    %7 = vsyncpa [#allocation3], 0
    %8 = vsyncpa [#allocation6], 0
    %s9 = scalar_lea.sflag [#allocation6], 1
    %10 = vsyncpa %s9, 0
    %11 = vsyncpa [#allocation4], 0
    %s12 = scalar_lea.sflag [#allocation4], 1
    %13 = vsyncpa %s12, 0
    loop: start=0, step=1, limit=4
    $region2: #{tpu_custom_call.1} parent=1 // loop_pre_header
      _
    $region3: #{tpu_custom_call.1} parent=1 // loop_header
      %s15 = sphi 0, %s19
      %p16 = scmp.ge.s32.totalorder %s15, 4
      %s23 = sphi 0, %s23
      %s25 = sphi 0, %s23
      %s26 = sphi 0, %s25
      %s40 = sphi 0, %s26
      %s46 = sphi 0, %s48
      %s49 = sphi 0, %s46
      %s50 = sphi 0, %s49
      %s66 = sphi 0, %s50
      %s72 = sphi 0, %s74
      %s75 = sphi 0, %s72
      %s76 = sphi 0, %s75
      %s92 = sphi 0, %s76
    $region4: #{tpu_custom_call.1} parent=1 // loop_header_branch
      %18 = sbr.rel (%p16) target = $region8
    $region5: #{tpu_custom_call.1} parent=1 // loop_body
      %s20 = ssub.s32 %s15, 1
      %s21 = ssub.s32 %s15, 2
      %s22 = sadd.s32 %s15, 1
      %s24 = sadd.s32 %s23, 1
      %p27 = scmp.eq.s32.totalorder %s15, 1
      %p28 = scmp.ne.s32.totalorder %s23, %s25
      %p29 = scmp.eq.s32.totalorder %s15, 0
      %p30 = por %p28, %p29
      %p31 = scmp.ne.s32.totalorder %s23, %s25
      %p32 = scmp.eq.s32.totalorder %s20, 1
      %p33 = por %p31, %p32
      %p34 = scmp.ne.s32.totalorder %s25, %s26
      %p35 = scmp.eq.s32.totalorder %s20, 0
      %p36 = por %p34, %p35
      %p37 = scmp.ne.s32.totalorder %s25, %s26
      %p38 = scmp.eq.s32.totalorder %s21, 1
      %p39 = por %p37, %p38
      %p41 = scmp.ne.s32.totalorder %s26, %s40
      %p42 = scmp.eq.s32.totalorder %s21, 0
      %p43 = por %p41, %p42
      %s44 = ssub.s32 %s15, %s22
      %p45 = scmp.eq.s32.totalorder %s44, 0
      %s47 = sadd.s32 %s46, 1
      %s48 = scalar_select %p45, %s46, %s47
      %p51 = pneg %p45
      %p52 = scmp.eq.s32.totalorder %s15, 1
      %p53 = por %p51, %p52
      %p54 = scmp.ne.s32.totalorder %s46, %s49
      %p55 = scmp.eq.s32.totalorder %s15, 0
      %p56 = por %p54, %p55
      %p57 = scmp.ne.s32.totalorder %s46, %s49
      %p58 = scmp.eq.s32.totalorder %s20, 1
      %p59 = por %p57, %p58
      %p60 = scmp.ne.s32.totalorder %s49, %s50
      %p61 = scmp.eq.s32.totalorder %s20, 0
      %p62 = por %p60, %p61
      %p63 = scmp.ne.s32.totalorder %s49, %s50
      %p64 = scmp.eq.s32.totalorder %s21, 1
      %p65 = por %p63, %p64
      %p67 = scmp.ne.s32.totalorder %s50, %s66
      %p68 = scmp.eq.s32.totalorder %s21, 0
      %p69 = por %p67, %p68
      %s70 = ssub.s32 %s15, %s22
      %p71 = scmp.eq.s32.totalorder %s70, 0
      %s73 = sadd.s32 %s72, 1
      %s74 = scalar_select %p71, %s72, %s73
      %p77 = pneg %p71
      %p78 = scmp.eq.s32.totalorder %s15, 1
      %p79 = por %p77, %p78
      %p80 = scmp.ne.s32.totalorder %s72, %s75
      %p81 = scmp.eq.s32.totalorder %s15, 0
      %p82 = por %p80, %p81
      %p83 = scmp.ne.s32.totalorder %s72, %s75
      %p84 = scmp.eq.s32.totalorder %s20, 1
      %p85 = por %p83, %p84
      %p86 = scmp.ne.s32.totalorder %s75, %s76
      %p87 = scmp.eq.s32.totalorder %s20, 0
      %p88 = por %p86, %p87
      %p89 = scmp.ne.s32.totalorder %s75, %s76
      %p90 = scmp.eq.s32.totalorder %s21, 1
      %p91 = por %p89, %p90
      %p93 = scmp.ne.s32.totalorder %s76, %s92
      %p94 = scmp.eq.s32.totalorder %s21, 0
      %p95 = por %p93, %p94
      %p96 = scmp.le.s32.totalorder 1, %s15
      %p97 = scmp.lt.s32.totalorder %s15, 3
      %p98 = pnand %p96, %p97
      %p99 = pneg %p98
      // Predicated region
      $region9: #{tpu_custom_call.1} parent=5 // pred_check
        _
      $region10: #{tpu_custom_call.1} parent=5 // pred_check_branch
        %101 = sbr.rel (%p98) target = $region12
      $region11: #{tpu_custom_call.1} parent=5 // pred_region
        %s102 = ssub.s32 %s15, 1
        // Predicated region
        $region13: #{tpu_custom_call.1} parent=11 // pred_check
          %p103 = pneg %p36
        $region14: #{tpu_custom_call.1} parent=11 // pred_check_branch
          %105 = sbr.rel (%p103) target = $region16
        $region15: #{tpu_custom_call.1} parent=11 // pred_region
          %s107 = ssub.s32 128, 128
          %108 = vsyncadd [#allocation3], %s107
          %s110 = sshll.u32 [#allocation2], 4
          %s111 = int_to_ptr.vmem [resolvable:$true] %s110
          %113 = dma.hbm_to_vmem [thread:$0]  %s0, 128, %s111, [#allocation3]
        $region16: #{tpu_custom_call.1} parent=11 // pred_fallthru
          _
      $region12: #{tpu_custom_call.1} parent=5 // pred_fallthru
        _
      %p114 = scmp.lt.s32.totalorder %s15, 2
      // Predicated region
      $region17: #{tpu_custom_call.1} parent=5 // pred_check
        %p115 = pneg %p114
      $region18: #{tpu_custom_call.1} parent=5 // pred_check_branch
        %117 = sbr.rel (%p115) target = $region20
      $region19: #{tpu_custom_call.1} parent=5 // pred_region
        // Predicated region
        $region21: #{tpu_custom_call.1} parent=19 // pred_check
          %p118 = pneg %p56
        $region22: #{tpu_custom_call.1} parent=19 // pred_check_branch
          %120 = sbr.rel (%p118) target = $region24
        $region23: #{tpu_custom_call.1} parent=19 // pred_region
          %s121 = sand.u32 %s46, 1
          %s122 = scalar_lea.sflag [#allocation6], %s121
          %s123 = sand.u32 %s46, 1
          %s124 = smul.addr %s123, 8
          %s125 = scalar_lea.vmem [#allocation5], %s124
          %s127 = ssub.s32 128, 128
          %128 = vsyncadd %s122, %s127
          %s129 = smul.addr %s15, 128
          %s130 = scalar_lea.hbm %s1, %s129
          %s132 = sshll.u32 %s125, 4
          %s133 = int_to_ptr.vmem [resolvable:$true] %s132
          %135 = dma.hbm_to_vmem [thread:$0]  %s130, 128, %s133, %s122
        $region24: #{tpu_custom_call.1} parent=19 // pred_fallthru
          _
      $region20: #{tpu_custom_call.1} parent=5 // pred_fallthru
        _
      %p136 = scmp.le.s32.totalorder 1, %s15
      %p137 = scmp.lt.s32.totalorder %s15, 3
      %p138 = pnand %p136, %p137
      %p139 = pneg %p138
      // Predicated region
      $region25: #{tpu_custom_call.1} parent=5 // pred_check
        _
      $region26: #{tpu_custom_call.1} parent=5 // pred_check_branch
        %141 = sbr.rel (%p138) target = $region28
      $region27: #{tpu_custom_call.1} parent=5 // pred_region
        %s142 = ssub.s32 %s15, 1
        // Predicated region
        $region29: #{tpu_custom_call.1} parent=27 // pred_check
          %p143 = pneg %p36
        $region30: #{tpu_custom_call.1} parent=27 // pred_check_branch
          %145 = sbr.rel (%p143) target = $region32
        $region31: #{tpu_custom_call.1} parent=27 // pred_region
          %146 = dma.done [#allocation3], 128
        $region32: #{tpu_custom_call.1} parent=27 // pred_fallthru
          _
        %s147 = sand.u32 %s49, 1
        %s148 = scalar_lea.sflag [#allocation6], %s147
        %s149 = sand.u32 %s49, 1
        %s150 = smul.addr %s149, 8
        %s151 = scalar_lea.vmem [#allocation5], %s150
        // Predicated region
        $region33: #{tpu_custom_call.1} parent=27 // pred_check
          %p152 = pneg %p62
        $region34: #{tpu_custom_call.1} parent=27 // pred_check_branch
          %154 = sbr.rel (%p152) target = $region36
        $region35: #{tpu_custom_call.1} parent=27 // pred_region
          %155 = dma.done %s148, 128
        $region36: #{tpu_custom_call.1} parent=27 // pred_fallthru
          _
        %p156 = pneg %p36
        %p157 = pneg %p33
        %s158 = sand.u32 %s49, 1
        %s159 = scalar_lea.sflag [#allocation6], %s158
        %s160 = sand.u32 %s49, 1
        %s161 = smul.addr %s160, 8
        %s162 = scalar_lea.vmem [#allocation5], %s161
        %p163 = pneg %p62
        %p164 = pneg %p59
        %p165 = pneg %p88
        %p166 = pneg %p85
        %s167 = sand.u32 %s75, 1
        %s168 = scalar_lea.sflag [#allocation4], %s167
        %s169 = sand.u32 %s75, 1
        %s170 = smul.addr %s169, 8
        %s171 = scalar_lea.vmem [#allocation7], %s170
        %v172 = vld [vmem:[%s151] sm:$0xff]
        %v173 = vld [vmem:[#allocation2] sm:$0xff]
        %v174 = vadd.f32 %v172, %v173
        %175 = vst [vmem:[%s171] sm:$0xff] %v174
        %s176 = sand.u32 %s75, 1
        %s177 = scalar_lea.sflag [#allocation4], %s176
        %s178 = sand.u32 %s75, 1
        %s179 = smul.addr %s178, 8
        %s180 = scalar_lea.vmem [#allocation7], %s179
        // Predicated region
        $region37: #{tpu_custom_call.1} parent=27 // pred_check
          %p181 = pneg %p85
        $region38: #{tpu_custom_call.1} parent=27 // pred_check_branch
          %183 = sbr.rel (%p181) target = $region40
        $region39: #{tpu_custom_call.1} parent=27 // pred_region
          %s185 = ssub.s32 128, 128
          %186 = vsyncadd %s177, %s185
          %s187 = smul.addr %s20, 128
          %s188 = scalar_lea.hbm %s2, %s187
          %s190 = sshll.u32 %s180, 4
          %s191 = int_to_ptr.vmem [resolvable:$true] %s190
          %193 = dma.vmem_to_hbm [thread:$0]  %s191, 128, %s188, %s177
        $region40: #{tpu_custom_call.1} parent=27 // pred_fallthru
          _
      $region28: #{tpu_custom_call.1} parent=5 // pred_fallthru
        _
      %p194 = scmp.le.s32.totalorder 2, %s15
      // Predicated region
      $region41: #{tpu_custom_call.1} parent=5 // pred_check
        %p195 = pneg %p194
      $region42: #{tpu_custom_call.1} parent=5 // pred_check_branch
        %197 = sbr.rel (%p195) target = $region44
      $region43: #{tpu_custom_call.1} parent=5 // pred_region
        %s198 = ssub.s32 %s15, 2
        // Predicated region
        $region45: #{tpu_custom_call.1} parent=43 // pred_check
          %p199 = pneg %p91
        $region46: #{tpu_custom_call.1} parent=43 // pred_check_branch
          %201 = sbr.rel (%p199) target = $region48
        $region47: #{tpu_custom_call.1} parent=43 // pred_region
          %s202 = sand.u32 %s76, 1
          %s203 = scalar_lea.sflag [#allocation4], %s202
          %s204 = sand.u32 %s76, 1
          %s205 = smul.addr %s204, 8
          %s206 = scalar_lea.vmem [#allocation7], %s205
          %207 = dma.done %s203, 128
        $region48: #{tpu_custom_call.1} parent=43 // pred_fallthru
          _
      $region44: #{tpu_custom_call.1} parent=5 // pred_fallthru
        _
    $region6: #{tpu_custom_call.1} parent=1 // loop_footer
      %s19 = sadd.s32 1, %s15
    $region7: #{tpu_custom_call.1} parent=1 // loop_footer_branch
      %14 = sbr.rel target = $region3
    $region8: #{tpu_custom_call.1} parent=1 // loop_exit
      _
    %208 = vsyncpa [#allocation3], 1
    %s209 = scalar_lea.sflag [#allocation3], 1
    %210 = vsyncpa %s209, 1
    %211 = vsyncpa [#allocation6], 1
    %s212 = scalar_lea.sflag [#allocation6], 1
    %213 = vsyncpa %s212, 1
    %214 = vsyncpa [#allocation4], 1
    %s215 = scalar_lea.sflag [#allocation4], 1
    %216 = vsyncpa %s215, 1

// kernel: tpu_custom_call.1
$region0: #{tpu_custom_call.1}
  #allocation0 [shape = 'u32[]', space=smem, size = 0x4, offset = 0x4, fixed_abs, tag = 'smem constant byte address 0x4 - core index']
  #allocation1 [shape = 'u32[144,128]{1,0:T(1,128)}', space=vmem, size = 0x12000, scoped, tag = 'internal scratch']
  %s0 = inlined_call_operand.hbm [shape: s32[8,8], index: 0, kind: input, shape index: {}]
  %s1 = inlined_call_operand.hbm [shape: bf16[8,8,128], index: 1, kind: input, shape index: {}]
  %s2 = inlined_call_operand.vmem [shape: bf16[8,128], index: 2, kind: input, shape index: {}]
  %s3 = inlined_call_operand.hbm [shape: bf16[128,384], index: 3, kind: input, shape index: {}]
  %s4 = inlined_call_operand.hbm [shape: bf16[128,512], index: 4, kind: input, shape index: {}]
  %s5 = inlined_call_operand.vmem [shape: f32[1,512], index: 5, kind: input, shape index: {}]
  %s6 = inlined_call_operand.hbm [shape: bf16[512,128], index: 6, kind: input, shape index: {}]
  %s7 = inlined_call_operand.vmem [shape: f32[1,128], index: 7, kind: input, shape index: {}]
  %s8 = inlined_call_operand.hbm [shape: bf16[8,8,128], index: 8, kind: output, shape index: {}]
  %s9 = sld [smem:[#allocation0]]
  $region62: #{tpu_custom_call.1} parent=0
    _
  %s11 = ssub.s32 1, %s9
  %s12 = scalar_select 0, %s11, %s9
  $region1: #{tpu_custom_call.1} parent=0
    #allocation2 [shape = 'u8[4096]{0}', space=vmem, size = 0x1000, scoped, tag = 'input window, operand 0, single buffered']
    #allocation3 [shape = 's32[1]{0}', space=sflag, size = 0x4, scoped, tag = 'scoped memory for tpu_custom_call.1']
    #allocation4 [shape = 's32[1]{0}', space=sflag, size = 0x4, scoped, tag = 'scoped memory for tpu_custom_call.1']
    #allocation5 [shape = 'u8[16384]{0}', space=vmem, size = 0x4000, scoped, tag = 'input window, operand 1, single buffered']
    #allocation6 [shape = 's32[1]{0}', space=sflag, size = 0x4, scoped, tag = 'scoped memory for tpu_custom_call.1']
    #allocation7 [shape = 'u8[98304]{0}', space=vmem, size = 0x18000, scoped, tag = 'input window, operand 3, single buffered']
    #allocation8 [shape = 'u8[131072]{0}', space=vmem, size = 0x20000, scoped, tag = 'input window, operand 4, single buffered']
    #allocation9 [shape = 's32[1]{0}', space=sflag, size = 0x4, scoped, tag = 'scoped memory for tpu_custom_call.1']
    #allocation10 [shape = 'u8[131072]{0}', space=vmem, size = 0x20000, scoped, tag = 'input window, operand 6, single buffered']
    #allocation11 [shape = 'u8[16384]{0}', space=vmem, size = 0x4000, scoped, tag = 'output window, operand 0, single buffered']
    %13 = vsyncpa [#allocation3], 0
    %14 = vsyncpa [#allocation6], 0
    %15 = vsyncpa [#allocation9], 0
    %16 = vsyncpa [#allocation4], 0
    // Predicated region
    $region2: #{tpu_custom_call.1} parent=1 // pred_check
      _
    $region3: #{tpu_custom_call.1} parent=1 // pred_check_branch
      %18 = sbr.rel (0) target = $region5
    $region4: #{tpu_custom_call.1} parent=1 // pred_region
      %s20 = ssub.s32 128, 128
      %21 = vsyncadd [#allocation3], %s20
      %s23 = sshll.u32 [#allocation2], 4
      %s24 = int_to_ptr.vmem [resolvable:$true] %s23
      %26 = dma.hbm_to_vmem [thread:$0]  %s0, 128, %s24, [#allocation3]
    $region5: #{tpu_custom_call.1} parent=1 // pred_fallthru
      _
    // Predicated region
    $region6: #{tpu_custom_call.1} parent=1 // pred_check
      _
    $region7: #{tpu_custom_call.1} parent=1 // pred_check_branch
      %28 = sbr.rel (0) target = $region9
    $region8: #{tpu_custom_call.1} parent=1 // pred_region
      %s30 = ssub.s32 512, 512
      %31 = vsyncadd [#allocation6], %s30
      %s32 = sshll.u32 [#allocation5], 4
      %s33 = int_to_ptr.vmem [resolvable:$true] %s32
      %38 = dma.hbm_to_vmem [thread:$0]  %s1, 512, %s33, [#allocation6], 64, 64, 4
    $region9: #{tpu_custom_call.1} parent=1 // pred_fallthru
      _
    // Predicated region
    $region10: #{tpu_custom_call.1} parent=1 // pred_check
      _
    $region11: #{tpu_custom_call.1} parent=1 // pred_check_branch
      %40 = sbr.rel (0) target = $region13
    $region12: #{tpu_custom_call.1} parent=1 // pred_region
      _
    $region13: #{tpu_custom_call.1} parent=1 // pred_fallthru
      _
    // Predicated region
    $region14: #{tpu_custom_call.1} parent=1 // pred_check
      _
    $region15: #{tpu_custom_call.1} parent=1 // pred_check_branch
      %42 = sbr.rel (0) target = $region17
    $region16: #{tpu_custom_call.1} parent=1 // pred_region
      %s44 = ssub.s32 3072, 3072
      %45 = vsyncadd [#allocation6], %s44
      %s46 = sshll.u32 [#allocation7], 4
      %s47 = int_to_ptr.vmem [resolvable:$true] %s46
      %52 = dma.hbm_to_vmem [thread:$0]  %s3, 3072, %s47, [#allocation6], 192, 192, 12
    $region17: #{tpu_custom_call.1} parent=1 // pred_fallthru
      _
    // Predicated region
    $region18: #{tpu_custom_call.1} parent=1 // pred_check
      _
    $region19: #{tpu_custom_call.1} parent=1 // pred_check_branch
      %54 = sbr.rel (0) target = $region21
    $region20: #{tpu_custom_call.1} parent=1 // pred_region
      %s56 = ssub.s32 4096, 4096
      %57 = vsyncadd [#allocation9], %s56
      %s58 = sshll.u32 [#allocation8], 4
      %s59 = int_to_ptr.vmem [resolvable:$true] %s58
      %64 = dma.hbm_to_vmem [thread:$0]  %s4, 4096, %s59, [#allocation9], 256, 256, 16
    $region21: #{tpu_custom_call.1} parent=1 // pred_fallthru
      _
    // Predicated region
    $region22: #{tpu_custom_call.1} parent=1 // pred_check
      _
    $region23: #{tpu_custom_call.1} parent=1 // pred_check_branch
      %66 = sbr.rel (0) target = $region25
    $region24: #{tpu_custom_call.1} parent=1 // pred_region
      _
    $region25: #{tpu_custom_call.1} parent=1 // pred_fallthru
      _
    // Predicated region
    $region26: #{tpu_custom_call.1} parent=1 // pred_check
      _
    $region27: #{tpu_custom_call.1} parent=1 // pred_check_branch
      %68 = sbr.rel (0) target = $region29
    $region28: #{tpu_custom_call.1} parent=1 // pred_region
      %s70 = ssub.s32 4096, 4096
      %71 = vsyncadd [#allocation9], %s70
      %s72 = sshll.u32 [#allocation10], 4
      %s73 = int_to_ptr.vmem [resolvable:$true] %s72
      %78 = dma.hbm_to_vmem [thread:$0]  %s6, 4096, %s73, [#allocation9], 64, 64, 4
    $region29: #{tpu_custom_call.1} parent=1 // pred_fallthru
      _
    // Predicated region
    $region30: #{tpu_custom_call.1} parent=1 // pred_check
      _
    $region31: #{tpu_custom_call.1} parent=1 // pred_check_branch
      %80 = sbr.rel (0) target = $region33
    $region32: #{tpu_custom_call.1} parent=1 // pred_region
      _
    $region33: #{tpu_custom_call.1} parent=1 // pred_fallthru
      _
    // Predicated region
    $region34: #{tpu_custom_call.1} parent=1 // pred_check
      _
    $region35: #{tpu_custom_call.1} parent=1 // pred_check_branch
      %82 = sbr.rel (0) target = $region37
    $region36: #{tpu_custom_call.1} parent=1 // pred_region
      %83 = dma.done [#allocation3], 128
    $region37: #{tpu_custom_call.1} parent=1 // pred_fallthru
      _
    // Predicated region
    $region38: #{tpu_custom_call.1} parent=1 // pred_check
      _
    $region39: #{tpu_custom_call.1} parent=1 // pred_check_branch
      %85 = sbr.rel (0) target = $region41
    $region40: #{tpu_custom_call.1} parent=1 // pred_region
      %86 = dma.done [#allocation6], 512
    $region41: #{tpu_custom_call.1} parent=1 // pred_fallthru
      _
    // Predicated region
    $region42: #{tpu_custom_call.1} parent=1 // pred_check
      _
    $region43: #{tpu_custom_call.1} parent=1 // pred_check_branch
      %88 = sbr.rel (0) target = $region45
    $region44: #{tpu_custom_call.1} parent=1 // pred_region
      %89 = dma.done [#allocation6], 3072
    $region45: #{tpu_custom_call.1} parent=1 // pred_fallthru
      _
    // Predicated region
    $region46: #{tpu_custom_call.1} parent=1 // pred_check
      _
    $region47: #{tpu_custom_call.1} parent=1 // pred_check_branch
      %91 = sbr.rel (0) target = $region49
    $region48: #{tpu_custom_call.1} parent=1 // pred_region
      %92 = dma.done [#allocation9], 4096
    $region49: #{tpu_custom_call.1} parent=1 // pred_fallthru
      _
    // Predicated region
    $region50: #{tpu_custom_call.1} parent=1 // pred_check
      _
    $region51: #{tpu_custom_call.1} parent=1 // pred_check_branch
      %94 = sbr.rel (0) target = $region53
    $region52: #{tpu_custom_call.1} parent=1 // pred_region
      %95 = dma.done [#allocation9], 4096
    $region53: #{tpu_custom_call.1} parent=1 // pred_fallthru
      _
    %v97 = vld [vmem:[#allocation2] sm:$0xff]
    %v98 = vld [vmem:[#allocation5] sm:$0xf]
    %v99 = vld [vmem:[#allocation5 + $0x4] sm:$0xf]
    %v100 = vld [vmem:[#allocation5 + $0x8] sm:$0xf]
    %v101 = vld [vmem:[#allocation5 + $0xc] sm:$0xf]
    %v102 = vld [vmem:[#allocation5 + $0x10] sm:$0xf]
    %v103 = vld [vmem:[#allocation5 + $0x14] sm:$0xf]
    %v104 = vld [vmem:[#allocation5 + $0x18] sm:$0xf]
    %v105 = vld [vmem:[#allocation5 + $0x1c] sm:$0xf]
    %v106 = vld [vmem:[%s2] sm:$0xf]
    %v107 = vld [vmem:[#allocation7] sm:$0xff]
    %v108 = vld [vmem:[#allocation7 + $0x8] sm:$0xf]
    %v109 = vld [vmem:[#allocation7 + $0xc] sm:$0xff]
    %v110 = vld [vmem:[#allocation7 + $0x14] sm:$0xf]
    %v111 = vld [vmem:[#allocation7 + $0x18] sm:$0xff]
    %v112 = vld [vmem:[#allocation7 + $0x20] sm:$0xf]
    %v113 = vld [vmem:[#allocation7 + $0x24] sm:$0xff]
    %v114 = vld [vmem:[#allocation7 + $0x2c] sm:$0xf]
    %v115 = vld [vmem:[#allocation7 + $0x30] sm:$0xff]
    %v116 = vld [vmem:[#allocation7 + $0x38] sm:$0xf]
    %v117 = vld [vmem:[#allocation7 + $0x3c] sm:$0xff]
    %v118 = vld [vmem:[#allocation7 + $0x44] sm:$0xf]
    %v119 = vld [vmem:[#allocation7 + $0x48] sm:$0xff]
    %v120 = vld [vmem:[#allocation7 + $0x50] sm:$0xf]
    %v121 = vld [vmem:[#allocation7 + $0x54] sm:$0xff]
    %v122 = vld [vmem:[#allocation7 + $0x5c] sm:$0xf]
    %v123 = vld [vmem:[#allocation7 + $0x60] sm:$0xff]
    %v124 = vld [vmem:[#allocation7 + $0x68] sm:$0xf]
    %v125 = vld [vmem:[#allocation7 + $0x6c] sm:$0xff]
    %v126 = vld [vmem:[#allocation7 + $0x74] sm:$0xf]
    %v127 = vld [vmem:[#allocation7 + $0x78] sm:$0xff]
    %v128 = vld [vmem:[#allocation7 + $0x80] sm:$0xf]
    %v129 = vld [vmem:[#allocation7 + $0x84] sm:$0xff]
    %v130 = vld [vmem:[#allocation7 + $0x8c] sm:$0xf]
    %v131 = vld [vmem:[#allocation7 + $0x90] sm:$0xff]
    %v132 = vld [vmem:[#allocation7 + $0x98] sm:$0xf]
    %v133 = vld [vmem:[#allocation7 + $0x9c] sm:$0xff]
    %v134 = vld [vmem:[#allocation7 + $0xa4] sm:$0xf]
    %v135 = vld [vmem:[#allocation7 + $0xa8] sm:$0xff]
    %v136 = vld [vmem:[#allocation7 + $0xb0] sm:$0xf]
    %v137 = vld [vmem:[#allocation7 + $0xb4] sm:$0xff]
    %v138 = vld [vmem:[#allocation7 + $0xbc] sm:$0xf]
    %v139 = vld [vmem:[#allocation8] sm:$0xff]
    %v140 = vld [vmem:[#allocation8 + $0x8] sm:$0xff]
    %v141 = vld [vmem:[#allocation8 + $0x10] sm:$0xff]
    %v142 = vld [vmem:[#allocation8 + $0x18] sm:$0xff]
    %v143 = vld [vmem:[#allocation8 + $0x20] sm:$0xff]
    %v144 = vld [vmem:[#allocation8 + $0x28] sm:$0xff]
    %v145 = vld [vmem:[#allocation8 + $0x30] sm:$0xff]
    %v146 = vld [vmem:[#allocation8 + $0x38] sm:$0xff]
    %v147 = vld [vmem:[#allocation8 + $0x40] sm:$0xff]
    %v148 = vld [vmem:[#allocation8 + $0x48] sm:$0xff]
    %v149 = vld [vmem:[#allocation8 + $0x50] sm:$0xff]
    %v150 = vld [vmem:[#allocation8 + $0x58] sm:$0xff]
    %v151 = vld [vmem:[#allocation8 + $0x60] sm:$0xff]
    %v152 = vld [vmem:[#allocation8 + $0x68] sm:$0xff]
    %v153 = vld [vmem:[#allocation8 + $0x70] sm:$0xff]
    %v154 = vld [vmem:[#allocation8 + $0x78] sm:$0xff]
    %v155 = vld [vmem:[#allocation8 + $0x80] sm:$0xff]
    %v156 = vld [vmem:[#allocation8 + $0x88] sm:$0xff]
    %v157 = vld [vmem:[#allocation8 + $0x90] sm:$0xff]
    %v158 = vld [vmem:[#allocation8 + $0x98] sm:$0xff]
    %v159 = vld [vmem:[#allocation8 + $0xa0] sm:$0xff]
    %v160 = vld [vmem:[#allocation8 + $0xa8] sm:$0xff]
    %v161 = vld [vmem:[#allocation8 + $0xb0] sm:$0xff]
    %v162 = vld [vmem:[#allocation8 + $0xb8] sm:$0xff]
    %v163 = vld [vmem:[#allocation8 + $0xc0] sm:$0xff]
    %v164 = vld [vmem:[#allocation8 + $0xc8] sm:$0xff]
    %v165 = vld [vmem:[#allocation8 + $0xd0] sm:$0xff]
    %v166 = vld [vmem:[#allocation8 + $0xd8] sm:$0xff]
    %v167 = vld [vmem:[#allocation8 + $0xe0] sm:$0xff]
    %v168 = vld [vmem:[#allocation8 + $0xe8] sm:$0xff]
    %v169 = vld [vmem:[#allocation8 + $0xf0] sm:$0xff]
    %v170 = vld [vmem:[#allocation8 + $0xf8] sm:$0xff]
    %v171 = vld [vmem:[%s5] sm:$0xf]
    %v172 = vld [vmem:[#allocation10] sm:$0xf]
    %v173 = vld [vmem:[#allocation10 + $0x4] sm:$0xf]
    %v174 = vld [vmem:[#allocation10 + $0x8] sm:$0xf]
    %v175 = vld [vmem:[#allocation10 + $0xc] sm:$0xf]
    %v176 = vld [vmem:[#allocation10 + $0x10] sm:$0xf]
    %v177 = vld [vmem:[#allocation10 + $0x14] sm:$0xf]
    %v178 = vld [vmem:[#allocation10 + $0x18] sm:$0xf]
    %v179 = vld [vmem:[#allocation10 + $0x1c] sm:$0xf]
    %v180 = vld [vmem:[#allocation10 + $0x20] sm:$0xf]
    %v181 = vld [vmem:[#allocation10 + $0x24] sm:$0xf]
    %v182 = vld [vmem:[#allocation10 + $0x28] sm:$0xf]
    %v183 = vld [vmem:[#allocation10 + $0x2c] sm:$0xf]
    %v184 = vld [vmem:[#allocation10 + $0x30] sm:$0xf]
    %v185 = vld [vmem:[#allocation10 + $0x34] sm:$0xf]
    %v186 = vld [vmem:[#allocation10 + $0x38] sm:$0xf]
    %v187 = vld [vmem:[#allocation10 + $0x3c] sm:$0xf]
    %v188 = vld [vmem:[#allocation10 + $0x40] sm:$0xf]
    %v189 = vld [vmem:[#allocation10 + $0x44] sm:$0xf]
    %v190 = vld [vmem:[#allocation10 + $0x48] sm:$0xf]
    %v191 = vld [vmem:[#allocation10 + $0x4c] sm:$0xf]
    %v192 = vld [vmem:[#allocation10 + $0x50] sm:$0xf]
    %v193 = vld [vmem:[#allocation10 + $0x54] sm:$0xf]
    %v194 = vld [vmem:[#allocation10 + $0x58] sm:$0xf]
    %v195 = vld [vmem:[#allocation10 + $0x5c] sm:$0xf]
    %v196 = vld [vmem:[#allocation10 + $0x60] sm:$0xf]
    %v197 = vld [vmem:[#allocation10 + $0x64] sm:$0xf]
    %v198 = vld [vmem:[#allocation10 + $0x68] sm:$0xf]
    %v199 = vld [vmem:[#allocation10 + $0x6c] sm:$0xf]
    %v200 = vld [vmem:[#allocation10 + $0x70] sm:$0xf]
    %v201 = vld [vmem:[#allocation10 + $0x74] sm:$0xf]
    %v202 = vld [vmem:[#allocation10 + $0x78] sm:$0xf]
    %v203 = vld [vmem:[#allocation10 + $0x7c] sm:$0xf]
    %v204 = vld [vmem:[#allocation10 + $0x80] sm:$0xf]
    %v205 = vld [vmem:[#allocation10 + $0x84] sm:$0xf]
    %v206 = vld [vmem:[#allocation10 + $0x88] sm:$0xf]
    %v207 = vld [vmem:[#allocation10 + $0x8c] sm:$0xf]
    %v208 = vld [vmem:[#allocation10 + $0x90] sm:$0xf]
    %v209 = vld [vmem:[#allocation10 + $0x94] sm:$0xf]
    %v210 = vld [vmem:[#allocation10 + $0x98] sm:$0xf]
    %v211 = vld [vmem:[#allocation10 + $0x9c] sm:$0xf]
    %v212 = vld [vmem:[#allocation10 + $0xa0] sm:$0xf]
    %v213 = vld [vmem:[#allocation10 + $0xa4] sm:$0xf]
    %v214 = vld [vmem:[#allocation10 + $0xa8] sm:$0xf]
    %v215 = vld [vmem:[#allocation10 + $0xac] sm:$0xf]
    %v216 = vld [vmem:[#allocation10 + $0xb0] sm:$0xf]
    %v217 = vld [vmem:[#allocation10 + $0xb4] sm:$0xf]
    %v218 = vld [vmem:[#allocation10 + $0xb8] sm:$0xf]
    %v219 = vld [vmem:[#allocation10 + $0xbc] sm:$0xf]
    %v220 = vld [vmem:[#allocation10 + $0xc0] sm:$0xf]
    %v221 = vld [vmem:[#allocation10 + $0xc4] sm:$0xf]
    %v222 = vld [vmem:[#allocation10 + $0xc8] sm:$0xf]
    %v223 = vld [vmem:[#allocation10 + $0xcc] sm:$0xf]
    %v224 = vld [vmem:[#allocation10 + $0xd0] sm:$0xf]
    %v225 = vld [vmem:[#allocation10 + $0xd4] sm:$0xf]
    %v226 = vld [vmem:[#allocation10 + $0xd8] sm:$0xf]
    %v227 = vld [vmem:[#allocation10 + $0xdc] sm:$0xf]
    %v228 = vld [vmem:[#allocation10 + $0xe0] sm:$0xf]
    %v229 = vld [vmem:[#allocation10 + $0xe4] sm:$0xf]
    %v230 = vld [vmem:[#allocation10 + $0xe8] sm:$0xf]
    %v231 = vld [vmem:[#allocation10 + $0xec] sm:$0xf]
    %v232 = vld [vmem:[#allocation10 + $0xf0] sm:$0xf]
    %v233 = vld [vmem:[#allocation10 + $0xf4] sm:$0xf]
    %v234 = vld [vmem:[#allocation10 + $0xf8] sm:$0xf]
    %v235 = vld [vmem:[#allocation10 + $0xfc] sm:$0xf]
    %v236 = vld [vmem:[%s7] sm:$0x1]
    %v237 = vadd.bf16 %v98, %v106
    %v238 = vadd.bf16 %v99, %v106
    %v239 = vadd.bf16 %v100, %v106
    %v240 = vadd.bf16 %v101, %v106
    %v241 = vadd.bf16 %v102, %v106
    %v242 = vadd.bf16 %v103, %v106
    %v243 = vadd.bf16 %v104, %v106
    %v244 = vadd.bf16 %v105, %v106
    %v253 = vunpack.c.l.b16 %v237
    %v254 = vunpack.c.l.b16 %v238
    %v255 = vunpack.c.l.b16 %v239
    %v256 = vunpack.c.l.b16 %v240
    %v257 = vunpack.c.l.b16 %v241
    %v258 = vunpack.c.l.b16 %v242
    %v259 = vunpack.c.l.b16 %v243
    %v260 = vunpack.c.l.b16 %v244
    %v261 = vpack.c.b16 %v254, %v253
    %v262 = vpack.c.b16 %v256, %v255
    %v263 = vpack.c.b16 %v258, %v257
    %v264 = vpack.c.b16 %v260, %v259
    %v301 = vunpack.c.l.b16 %v107
    %v302 = vunpack.c.h.b16 %v107
    %v303 = vunpack.c.l.b16 %v108
    %v304 = vunpack.c.l.b16 %v109
    %v305 = vunpack.c.h.b16 %v109
    %v306 = vunpack.c.l.b16 %v110
    %v307 = vunpack.c.l.b16 %v111
    %v308 = vunpack.c.h.b16 %v111
    %v309 = vunpack.c.l.b16 %v112
    %v310 = vunpack.c.l.b16 %v113
    %v311 = vunpack.c.h.b16 %v113
    %v312 = vunpack.c.l.b16 %v114
    %v313 = vunpack.c.l.b16 %v115
    %v314 = vunpack.c.h.b16 %v115
    %v315 = vunpack.c.l.b16 %v116
    %v316 = vunpack.c.l.b16 %v117
    %v317 = vunpack.c.h.b16 %v117
    %v318 = vunpack.c.l.b16 %v118
    %v319 = vunpack.c.l.b16 %v119
    %v320 = vunpack.c.h.b16 %v119
    %v321 = vunpack.c.l.b16 %v120
    %v322 = vunpack.c.l.b16 %v121
    %v323 = vunpack.c.h.b16 %v121
    %v324 = vunpack.c.l.b16 %v122
    %v325 = vunpack.c.l.b16 %v123
    %v326 = vunpack.c.h.b16 %v123
    %v327 = vunpack.c.l.b16 %v124
    %v328 = vunpack.c.l.b16 %v125
    %v329 = vunpack.c.h.b16 %v125
    %v330 = vunpack.c.l.b16 %v126
    %v331 = vunpack.c.l.b16 %v127
    %v332 = vunpack.c.h.b16 %v127
    %v333 = vunpack.c.l.b16 %v128
    %v334 = vunpack.c.l.b16 %v129
    %v335 = vunpack.c.h.b16 %v129
    %v336 = vunpack.c.l.b16 %v130
    %v337 = vunpack.c.l.b16 %v131
    %v338 = vunpack.c.h.b16 %v131
    %v339 = vunpack.c.l.b16 %v132
    %v340 = vunpack.c.l.b16 %v133
    %v341 = vunpack.c.h.b16 %v133
    %v342 = vunpack.c.l.b16 %v134
    %v343 = vunpack.c.l.b16 %v135
    %v344 = vunpack.c.h.b16 %v135
    %v345 = vunpack.c.l.b16 %v136
    %v346 = vunpack.c.l.b16 %v137
    %v347 = vunpack.c.h.b16 %v137
    %v348 = vunpack.c.l.b16 %v138
    %v349 = vpack.c.b16 %v304, %v301
    %v350 = vpack.c.b16 %v305, %v302
    %v351 = vpack.c.b16 %v306, %v303
    %v352 = vpack.c.b16 %v310, %v307
    %v353 = vpack.c.b16 %v311, %v308
    %v354 = vpack.c.b16 %v312, %v309
    %v355 = vpack.c.b16 %v316, %v313
    %v356 = vpack.c.b16 %v317, %v314
    %v357 = vpack.c.b16 %v318, %v315
    %v358 = vpack.c.b16 %v322, %v319
    %v359 = vpack.c.b16 %v323, %v320
    %v360 = vpack.c.b16 %v324, %v321
    %v361 = vpack.c.b16 %v328, %v325
    %v362 = vpack.c.b16 %v329, %v326
    %v363 = vpack.c.b16 %v330, %v327
    %v364 = vpack.c.b16 %v334, %v331
    %v365 = vpack.c.b16 %v335, %v332
    %v366 = vpack.c.b16 %v336, %v333
    %v367 = vpack.c.b16 %v340, %v337
    %v368 = vpack.c.b16 %v341, %v338
    %v369 = vpack.c.b16 %v342, %v339
    %v370 = vpack.c.b16 %v346, %v343
    %v371 = vpack.c.b16 %v347, %v344
    %v372 = vpack.c.b16 %v348, %v345
    %397 = vmatprep.subr.bf16.mxu0 %v350
    %398 = vmatpush1.bf16.msra.mxu0 %v349
    %399 = vmatprep.subr.bf16.mxu0 %v353
    %400 = vmatpush1.bf16.msra.mxu0 %v352
    %401 = vmatprep.subr.bf16.mxu0 %v356
    %402 = vmatpush1.bf16.msra.mxu0 %v355
    %403 = vmatprep.subr.bf16.mxu0 %v359
    %404 = vmatpush1.bf16.msra.mxu0 %v358
    %405 = vmatprep.subr.bf16.mxu0 %v362
    %406 = vmatpush1.bf16.msra.mxu0 %v361
    %407 = vmatprep.subr.bf16.mxu0 %v365
    %408 = vmatpush1.bf16.msra.mxu0 %v364
    %409 = vmatprep.subr.bf16.mxu0 %v368
    %410 = vmatpush1.bf16.msra.mxu0 %v367
    %411 = vmatprep.subr.bf16.mxu0 %v371
    %412 = vmatpush1.bf16.msra.mxu0 %v370
    %413 = vmatprep.subr.bf16.mxu0 0
    %414 = vmatpush1.bf16.msra.mxu0 0
    %415 = vmatprep.subr.bf16.mxu0 0
    %416 = vmatpush1.bf16.msra.mxu0 0
    %417 = vmatprep.subr.bf16.mxu0 0
    %418 = vmatpush1.bf16.msra.mxu0 0
    %419 = vmatprep.subr.bf16.mxu0 0
    %420 = vmatpush1.bf16.msra.mxu0 0
    %421 = vmatprep.subr.bf16.mxu0 0
    %422 = vmatpush1.bf16.msra.mxu0 0
    %423 = vmatprep.subr.bf16.mxu0 0
    %424 = vmatpush1.bf16.msra.mxu0 0
    %425 = vmatprep.subr.bf16.mxu0 0
    %426 = vmatpush1.bf16.msra.mxu0 0
    %427 = vmatprep.subr.bf16.mxu0 0
    %428 = vmatpush1.bf16.msra.mxu0 0
    %429 = vmatprep.mubr.bf16.mxu0 0
    %430 = vmatmul.mubr.bf16.gmra.mrb[0].mxu0 %v261
    %v431 = vpop.f32.mrb[0].mxu0
    %v432 = vadd.f32 0.0, %v431
    %v433 = vpop.f32.mrb[0].mxu0
    %v434 = vadd.f32 0.0, %v433
    %v435 = vpop.f32.mrb[0].mxu0
    %v436 = vadd.f32 0.0, %v435
    %v437 = vpop.f32.mrb[0].mxu0
    %v438 = vadd.f32 0.0, %v437
    %439 = vmatprep.mubr.bf16.mxu0 0
    %440 = vmatmul.mubr.bf16.gmra.mrb[0].mxu0 %v262
    %v441 = vpop.f32.mrb[0].mxu0
    %v442 = vadd.f32 0.0, %v441
    %v443 = vpop.f32.mrb[0].mxu0
    %v444 = vadd.f32 0.0, %v443
    %v445 = vpop.f32.mrb[0].mxu0
    %v446 = vadd.f32 0.0, %v445
    %v447 = vpop.f32.mrb[0].mxu0
    %v448 = vadd.f32 0.0, %v447
    %449 = vmatprep.mubr.bf16.mxu0 0
    %450 = vmatmul.mubr.bf16.gmra.mrb[0].mxu0 %v263
    %v451 = vpop.f32.mrb[0].mxu0
    %v452 = vadd.f32 0.0, %v451
    %v453 = vpop.f32.mrb[0].mxu0
    %v454 = vadd.f32 0.0, %v453
    %v455 = vpop.f32.mrb[0].mxu0
    %v456 = vadd.f32 0.0, %v455
    %v457 = vpop.f32.mrb[0].mxu0
    %v458 = vadd.f32 0.0, %v457
    %459 = vmatprep.mubr.bf16.mxu0 0
    %460 = vmatmul.mubr.bf16.gmra.mrb[0].mxu0 %v264
    %v461 = vpop.f32.mrb[0].mxu0
    %v462 = vadd.f32 0.0, %v461
    %v463 = vpop.f32.mrb[0].mxu0
    %v464 = vadd.f32 0.0, %v463
    %v465 = vpop.f32.mrb[0].mxu0
    %v466 = vadd.f32 0.0, %v465
    %v467 = vpop.f32.mrb[0].mxu0
    %v468 = vadd.f32 0.0, %v467
    %469 = vdwg.mxu0
    %470 = vmatprep.subr.bf16.mxu0 0
    %471 = vmatpush1.bf16.msra.mxu0 %v351
    %472 = vmatprep.subr.bf16.mxu0 0
    %473 = vmatpush1.bf16.msra.mxu0 %v354
    %474 = vmatprep.subr.bf16.mxu0 0
    %475 = vmatpush1.bf16.msra.mxu0 %v357
    %476 = vmatprep.subr.bf16.mxu0 0
    %477 = vmatpush1.bf16.msra.mxu0 %v360
    %478 = vmatprep.subr.bf16.mxu0 0
    %479 = vmatpush1.bf16.msra.mxu0 %v363
    %480 = vmatprep.subr.bf16.mxu0 0
    %481 = vmatpush1.bf16.msra.mxu0 %v366
    %482 = vmatprep.subr.bf16.mxu0 0
    %483 = vmatpush1.bf16.msra.mxu0 %v369
    %484 = vmatprep.subr.bf16.mxu0 0
    %485 = vmatpush1.bf16.msra.mxu0 %v372
    %486 = vmatprep.subr.bf16.mxu0 0
    %487 = vmatpush1.bf16.msra.mxu0 0
    %488 = vmatprep.subr.bf16.mxu0 0
    %489 = vmatpush1.bf16.msra.mxu0 0
    %490 = vmatprep.subr.bf16.mxu0 0
    %491 = vmatpush1.bf16.msra.mxu0 0
    %492 = vmatprep.subr.bf16.mxu0 0
    %493 = vmatpush1.bf16.msra.mxu0 0
    %494 = vmatprep.subr.bf16.mxu0 0
    %495 = vmatpush1.bf16.msra.mxu0 0
    %496 = vmatprep.subr.bf16.mxu0 0
    %497 = vmatpush1.bf16.msra.mxu0 0
    %498 = vmatprep.subr.bf16.mxu0 0
    %499 = vmatpush1.bf16.msra.mxu0 0
    %500 = vmatprep.subr.bf16.mxu0 0
    %501 = vmatpush1.bf16.msra.mxu0 0
    %502 = vmatprep.mubr.bf16.mxu0 0
    %503 = vmatmul.mubr.bf16.gmra.mrb[0].mxu0 %v261
    %v504 = vpop.f32.mrb[0].mxu0
    %v505 = vadd.f32 0.0, %v504
    %v506 = vpop.f32.mrb[0].mxu0
    %v507 = vpop.f32.mrb[0].mxu0
    %v508 = vadd.f32 0.0, %v507
    %v509 = vpop.f32.mrb[0].mxu0
    %510 = vmatprep.mubr.bf16.mxu0 0
    %511 = vmatmul.mubr.bf16.gmra.mrb[0].mxu0 %v262
    %v512 = vpop.f32.mrb[0].mxu0
    %v513 = vadd.f32 0.0, %v512
    %v514 = vpop.f32.mrb[0].mxu0
    %v515 = vpop.f32.mrb[0].mxu0
    %v516 = vadd.f32 0.0, %v515
    %v517 = vpop.f32.mrb[0].mxu0
    %518 = vmatprep.mubr.bf16.mxu0 0
    %519 = vmatmul.mubr.bf16.gmra.mrb[0].mxu0 %v263
    %v520 = vpop.f32.mrb[0].mxu0
    %v521 = vadd.f32 0.0, %v520
    %v522 = vpop.f32.mrb[0].mxu0
    %v523 = vpop.f32.mrb[0].mxu0
    %v524 = vadd.f32 0.0, %v523
    %v525 = vpop.f32.mrb[0].mxu0
    %526 = vmatprep.mubr.bf16.mxu0 0
    %527 = vmatmul.mubr.bf16.gmra.mrb[0].mxu0 %v264
    %v528 = vpop.f32.mrb[0].mxu0
    %v529 = vadd.f32 0.0, %v528
    %v530 = vpop.f32.mrb[0].mxu0
    %v531 = vpop.f32.mrb[0].mxu0
    %v532 = vadd.f32 0.0, %v531
    %v533 = vpop.f32.mrb[0].mxu0
    %534 = vdwg.mxu0
    %v535 = vpack.c.bf16 %v432, %v432
    %v536 = vpack.c.bf16 %v436, %v436
    %v537 = vpack.c.bf16 %v442, %v442
    %v538 = vpack.c.bf16 %v446, %v446
    %v539 = vpack.c.bf16 %v452, %v452
    %v540 = vpack.c.bf16 %v456, %v456
    %v541 = vpack.c.bf16 %v462, %v462
    %v542 = vpack.c.bf16 %v466, %v466
    %v543 = vpack.c.bf16 %v434, %v434
    %v544 = vpack.c.bf16 %v438, %v438
    %v545 = vpack.c.bf16 %v444, %v444
    %v546 = vpack.c.bf16 %v448, %v448
    %v547 = vpack.c.bf16 %v454, %v454
    %v548 = vpack.c.bf16 %v458, %v458
    %v549 = vpack.c.bf16 %v464, %v464
    %v550 = vpack.c.bf16 %v468, %v468
    %v551 = vpack.c.bf16 %v505, %v505
    %v552 = vpack.c.bf16 %v508, %v508
    %v553 = vpack.c.bf16 %v513, %v513
    %v554 = vpack.c.bf16 %v516, %v516
    %v555 = vpack.c.bf16 %v521, %v521
    %v556 = vpack.c.bf16 %v524, %v524
    %v557 = vpack.c.bf16 %v529, %v529
    %v558 = vpack.c.bf16 %v532, %v532
    %559 = vmatprep.subr.bf16.mxu0 0
    %560 = vmatpush1.bf16.xpose.msra.mxu0 %v543
    %561 = vmatprep.subr.bf16.mxu0 0
    %562 = vmatpush1.bf16.xpose.msra.mxu0 0
    %563 = vmatprep.subr.bf16.mxu0 0
    %564 = vmatpush1.bf16.xpose.msra.mxu0 0
    %565 = vmatprep.subr.bf16.mxu0 0
    %566 = vmatpush1.bf16.xpose.msra.mxu0 0
    %567 = vmatprep.subr.bf16.mxu0 0
    %568 = vmatpush1.bf16.xpose.msra.mxu0 0
    %569 = vmatprep.subr.bf16.mxu0 0
    %570 = vmatpush1.bf16.xpose.msra.mxu0 0
    %571 = vmatprep.subr.bf16.mxu0 0
    %572 = vmatpush1.bf16.xpose.msra.mxu0 0
    %573 = vmatprep.subr.bf16.mxu0 0
    %574 = vmatpush1.bf16.xpose.msra.mxu0 0
    %575 = vmatprep.subr.bf16.mxu0 0
    %576 = vmatpush1.bf16.xpose.msra.mxu0 0
    %577 = vmatprep.subr.bf16.mxu0 0
    %578 = vmatpush1.bf16.xpose.msra.mxu0 0
    %579 = vmatprep.subr.bf16.mxu0 0
    %580 = vmatpush1.bf16.xpose.msra.mxu0 0
    %581 = vmatprep.subr.bf16.mxu0 0
    %582 = vmatpush1.bf16.xpose.msra.mxu0 0
    %583 = vmatprep.subr.bf16.mxu0 0
    %584 = vmatpush1.bf16.xpose.msra.mxu0 0
    %585 = vmatprep.subr.bf16.mxu0 0
    %586 = vmatpush1.bf16.xpose.msra.mxu0 0
    %587 = vmatprep.subr.bf16.mxu0 0
    %588 = vmatpush1.bf16.xpose.msra.mxu0 0
    %589 = vmatprep.subr.bf16.mxu0 0
    %590 = vmatpush1.bf16.xpose.msra.mxu0 0
    %591 = vmatprep.mubr.bf16.mxu0 0
    %592 = vmatmul.mubr.bf16.gmra.mrb[0].mxu0 %v535
    %v593 = vpop.f32.mrb[0].mxu0
    %v594 = vadd.f32 0.0, %v593
    %v595 = vpop.f32.mrb[0].mxu0
    %v596 = vpop.f32.mrb[0].mxu0
    %v597 = vpop.f32.mrb[0].mxu0
    %598 = vdwg.mxu0
    %599 = vmatprep.subr.bf16.mxu0 0
    %600 = vmatpush1.bf16.xpose.msra.mxu0 %v544
    %601 = vmatprep.subr.bf16.mxu0 0
    %602 = vmatpush1.bf16.xpose.msra.mxu0 0
    %603 = vmatprep.subr.bf16.mxu0 0
    %604 = vmatpush1.bf16.xpose.msra.mxu0 0
    %605 = vmatprep.subr.bf16.mxu0 0
    %606 = vmatpush1.bf16.xpose.msra.mxu0 0
    %607 = vmatprep.subr.bf16.mxu0 0
    %608 = vmatpush1.bf16.xpose.msra.mxu0 0
    %609 = vmatprep.subr.bf16.mxu0 0
    %610 = vmatpush1.bf16.xpose.msra.mxu0 0
    %611 = vmatprep.subr.bf16.mxu0 0
    %612 = vmatpush1.bf16.xpose.msra.mxu0 0
    %613 = vmatprep.subr.bf16.mxu0 0
    %614 = vmatpush1.bf16.xpose.msra.mxu0 0
    %615 = vmatprep.subr.bf16.mxu0 0
    %616 = vmatpush1.bf16.xpose.msra.mxu0 0
    %617 = vmatprep.subr.bf16.mxu0 0
    %618 = vmatpush1.bf16.xpose.msra.mxu0 0
    %619 = vmatprep.subr.bf16.mxu0 0
    %620 = vmatpush1.bf16.xpose.msra.mxu0 0
    %621 = vmatprep.subr.bf16.mxu0 0
    %622 = vmatpush1.bf16.xpose.msra.mxu0 0
    %623 = vmatprep.subr.bf16.mxu0 0
    %624 = vmatpush1.bf16.xpose.msra.mxu0 0
    %625 = vmatprep.subr.bf16.mxu0 0
    %626 = vmatpush1.bf16.xpose.msra.mxu0 0
    %627 = vmatprep.subr.bf16.mxu0 0
    %628 = vmatpush1.bf16.xpose.msra.mxu0 0
    %629 = vmatprep.subr.bf16.mxu0 0
    %630 = vmatpush1.bf16.xpose.msra.mxu0 0
    %631 = vmatprep.mubr.bf16.mxu0 0
    %632 = vmatmul.mubr.bf16.gmra.mrb[0].mxu0 %v536
    %v633 = vpop.f32.mrb[0].mxu0
    %v634 = vadd.f32 0.0, %v633
    %v635 = vpop.f32.mrb[0].mxu0
    %v636 = vpop.f32.mrb[0].mxu0
    %v637 = vpop.f32.mrb[0].mxu0
    %638 = vdwg.mxu0
    %639 = vmatprep.subr.bf16.mxu0 0
    %640 = vmatpush1.bf16.xpose.msra.mxu0 %v545
    %641 = vmatprep.subr.bf16.mxu0 0
    %642 = vmatpush1.bf16.xpose.msra.mxu0 0
    %643 = vmatprep.subr.bf16.mxu0 0
    %644 = vmatpush1.bf16.xpose.msra.mxu0 0
    %645 = vmatprep.subr.bf16.mxu0 0
    %646 = vmatpush1.bf16.xpose.msra.mxu0 0
    %647 = vmatprep.subr.bf16.mxu0 0
    %648 = vmatpush1.bf16.xpose.msra.mxu0 0
    %649 = vmatprep.subr.bf16.mxu0 0
    %650 = vmatpush1.bf16.xpose.msra.mxu0 0
    %651 = vmatprep.subr.bf16.mxu0 0
    %652 = vmatpush1.bf16.xpose.msra.mxu0 0
    %653 = vmatprep.subr.bf16.mxu0 0
    %654 = vmatpush1.bf16.xpose.msra.mxu0 0
    %655 = vmatprep.subr.bf16.mxu0 0
    %656 = vmatpush1.bf16.xpose.msra.mxu0 0
    %657 = vmatprep.subr.bf16.mxu0 0
    %658 = vmatpush1.bf16.xpose.msra.mxu0 0
    %659 = vmatprep.subr.bf16.mxu0 0
    %660 = vmatpush1.bf16.xpose.msra.mxu0 0
    %661 = vmatprep.subr.bf16.mxu0 0
    %662 = vmatpush1.bf16.xpose.msra.mxu0 0
    %663 = vmatprep.subr.bf16.mxu0 0
    %664 = vmatpush1.bf16.xpose.msra.mxu0 0
    %665 = vmatprep.subr.bf16.mxu0 0
    %666 = vmatpush1.bf16.xpose.msra.mxu0 0
    %667 = vmatprep.subr.bf16.mxu0 0
    %668 = vmatpush1.bf16.xpose.msra.mxu0 0
    %669 = vmatprep.subr.bf16.mxu0 0
    %670 = vmatpush1.bf16.xpose.msra.mxu0 0
    %671 = vmatprep.mubr.bf16.mxu0 0
    %672 = vmatmul.mubr.bf16.gmra.mrb[0].mxu0 %v537
    %v673 = vpop.f32.mrb[0].mxu0
    %v674 = vadd.f32 0.0, %v673
    %v675 = vpop.f32.mrb[0].mxu0
    %v676 = vpop.f32.mrb[0].mxu0
    %v677 = vpop.f32.mrb[0].mxu0
    %678 = vdwg.mxu0
    %679 = vmatprep.subr.bf16.mxu0 0
    %680 = vmatpush1.bf16.xpose.msra.mxu0 %v546
    %681 = vmatprep.subr.bf16.mxu0 0
    %682 = vmatpush1.bf16.xpose.msra.mxu0 0
    %683 = vmatprep.subr.bf16.mxu0 0
    %684 = vmatpush1.bf16.xpose.msra.mxu0 0
    %685 = vmatprep.subr.bf16.mxu0 0
    %686 = vmatpush1.bf16.xpose.msra.mxu0 0
    %687 = vmatprep.subr.bf16.mxu0 0
    %688 = vmatpush1.bf16.xpose.msra.mxu0 0
    %689 = vmatprep.subr.bf16.mxu0 0
    %690 = vmatpush1.bf16.xpose.msra.mxu0 0
    %691 = vmatprep.subr.bf16.mxu0 0
    %692 = vmatpush1.bf16.xpose.msra.mxu0 0
    %693 = vmatprep.subr.bf16.mxu0 0
    %694 = vmatpush1.bf16.xpose.msra.mxu0 0
    %695 = vmatprep.subr.bf16.mxu0 0
    %696 = vmatpush1.bf16.xpose.msra.mxu0 0
    %697 = vmatprep.subr.bf16.mxu0 0
    %698 = vmatpush1.bf16.xpose.msra.mxu0 0
    %699 = vmatprep.subr.bf16.mxu0 0
    %700 = vmatpush1.bf16.xpose.msra.mxu0 0
    %701 = vmatprep.subr.bf16.mxu0 0
    %702 = vmatpush1.bf16.xpose.msra.mxu0 0
    %703 = vmatprep.subr.bf16.mxu0 0
    %704 = vmatpush1.bf16.xpose.msra.mxu0 0
    %705 = vmatprep.subr.bf16.mxu0 0
    %706 = vmatpush1.bf16.xpose.msra.mxu0 0
    %707 = vmatprep.subr.bf16.mxu0 0
    %708 = vmatpush1.bf16.xpose.msra.mxu0 0
    %709 = vmatprep.subr.bf16.mxu0 0
    %710 = vmatpush1.bf16.xpose.msra.mxu0 0
    %711 = vmatprep.mubr.bf16.mxu0 0
    %712 = vmatmul.mubr.bf16.gmra.mrb[0].mxu0 %v538
    %v713 = vpop.f32.mrb[0].mxu0
    %v714 = vadd.f32 0.0, %v713
    %v715 = vpop.f32.mrb[0].mxu0
    %v716 = vpop.f32.mrb[0].mxu0
    %v717 = vpop.f32.mrb[0].mxu0
    %718 = vdwg.mxu0
    %719 = vmatprep.subr.bf16.mxu0 0
    %720 = vmatpush1.bf16.xpose.msra.mxu0 %v547
    %721 = vmatprep.subr.bf16.mxu0 0
    %722 = vmatpush1.bf16.xpose.msra.mxu0 0
    %723 = vmatprep.subr.bf16.mxu0 0
    %724 = vmatpush1.bf16.xpose.msra.mxu0 0
    %725 = vmatprep.subr.bf16.mxu0 0
    %726 = vmatpush1.bf16.xpose.msra.mxu0 0
    %727 = vmatprep.subr.bf16.mxu0 0
    %728 = vmatpush1.bf16.xpose.msra.mxu0 0
    %729 = vmatprep.subr.bf16.mxu0 0
    %730 = vmatpush1.bf16.xpose.msra.mxu0 0
    %731 = vmatprep.subr.bf16.mxu0 0
    %732 = vmatpush1.bf16.xpose.msra.mxu0 0
    %733 = vmatprep.subr.bf16.mxu0 0
    %734 = vmatpush1.bf16.xpose.msra.mxu0 0
    %735 = vmatprep.subr.bf16.mxu0 0
    %736 = vmatpush1.bf16.xpose.msra.mxu0 0
    %737 = vmatprep.subr.bf16.mxu0 0
    %738 = vmatpush1.bf16.xpose.msra.mxu0 0
    %739 = vmatprep.subr.bf16.mxu0 0
    %740 = vmatpush1.bf16.xpose.msra.mxu0 0
    %741 = vmatprep.subr.bf16.mxu0 0
    %742 = vmatpush1.bf16.xpose.msra.mxu0 0
    %743 = vmatprep.subr.bf16.mxu0 0
    %744 = vmatpush1.bf16.xpose.msra.mxu0 0
    %745 = vmatprep.subr.bf16.mxu0 0
    %746 = vmatpush1.bf16.xpose.msra.mxu0 0
    %747 = vmatprep.subr.bf16.mxu0 0
    %748 = vmatpush1.bf16.xpose.msra.mxu0 0
    %749 = vmatprep.subr.bf16.mxu0 0
    %750 = vmatpush1.bf16.xpose.msra.mxu0 0
    %751 = vmatprep.mubr.bf16.mxu0 0
    %752 = vmatmul.mubr.bf16.gmra.mrb[0].mxu0 %v539
    %v753 = vpop.f32.mrb[0].mxu0
    %v754 = vadd.f32 0.0, %v753
    %v755 = vpop.f32.mrb[0].mxu0
    %v756 = vpop.f32.mrb[0].mxu0
    %v757 = vpop.f32.mrb[0].mxu0
    %758 = vdwg.mxu0
    %759 = vmatprep.subr.bf16.mxu0 0
    %760 = vmatpush1.bf16.xpose.msra.mxu0 %v548
    %761 = vmatprep.subr.bf16.mxu0 0
    %762 = vmatpush1.bf16.xpose.msra.mxu0 0
    %763 = vmatprep.subr.bf16.mxu0 0
    %764 = vmatpush1.bf16.xpose.msra.mxu0 0
    %765 = vmatprep.subr.bf16.mxu0 0
    %766 = vmatpush1.bf16.xpose.msra.mxu0 0
    %767 = vmatprep.subr.bf16.mxu0 0
    %768 = vmatpush1.bf16.xpose.msra.mxu0 0
    %769 = vmatprep.subr.bf16.mxu0 0
    %770 = vmatpush1.bf16.xpose.msra.mxu0 0
    %771 = vmatprep.subr.bf16.mxu0 0
    %772 = vmatpush1.bf16.xpose.msra.mxu0 0
    %773 = vmatprep.subr.bf16.mxu0 0
    %774 = vmatpush1.bf16.xpose.msra.mxu0 0
    %775 = vmatprep.subr.bf16.mxu0 0
    %776 = vmatpush1.bf16.xpose.msra.mxu0 0
    %777 = vmatprep.subr.bf16.mxu0 0
    %778 = vmatpush1.bf16.xpose.msra.mxu0 0
    %779 = vmatprep.subr.bf16.mxu0 0
    %780 = vmatpush1.bf16.xpose.msra.mxu0 0
    %781 = vmatprep.subr.bf16.mxu0 0
    %782 = vmatpush1.bf16.xpose.msra.mxu0 0
    %783 = vmatprep.subr.bf16.mxu0 0
    %784 = vmatpush1.bf16.xpose.msra.mxu0 0
    %785 = vmatprep.subr.bf16.mxu0 0
    %786 = vmatpush1.bf16.xpose.msra.mxu0 0
    %787 = vmatprep.subr.bf16.mxu0 0
    %788 = vmatpush1.bf16.xpose.msra.mxu0 0
    %789 = vmatprep.subr.bf16.mxu0 0
    %790 = vmatpush1.bf16.xpose.msra.mxu0 0
    %791 = vmatprep.mubr.bf16.mxu0 0
    %792 = vmatmul.mubr.bf16.gmra.mrb[0].mxu0 %v540
    %v793 = vpop.f32.mrb[0].mxu0
    %v794 = vadd.f32 0.0, %v793
    %v795 = vpop.f32.mrb[0].mxu0
    %v796 = vpop.f32.mrb[0].mxu0
    %v797 = vpop.f32.mrb[0].mxu0
    %798 = vdwg.mxu0
    %799 = vmatprep.subr.bf16.mxu0 0
    %800 = vmatpush1.bf16.xpose.msra.mxu0 %v549
    %801 = vmatprep.subr.bf16.mxu0 0
    %802 = vmatpush1.bf16.xpose.msra.mxu0 0
    %803 = vmatprep.subr.bf16.mxu0 0
    %804 = vmatpush1.bf16.xpose.msra.mxu0 0
    %805 = vmatprep.subr.bf16.mxu0 0
    %806 = vmatpush1.bf16.xpose.msra.mxu0 0
    %807 = vmatprep.subr.bf16.mxu0 0
    %808 = vmatpush1.bf16.xpose.msra.mxu0 0
    %809 = vmatprep.subr.bf16.mxu0 0
    %810 = vmatpush1.bf16.xpose.msra.mxu0 0
    %811 = vmatprep.subr.bf16.mxu0 0
    %812 = vmatpush1.bf16.xpose.msra.mxu0 0
    %813 = vmatprep.subr.bf16.mxu0 0
    %814 = vmatpush1.bf16.xpose.msra.mxu0 0
    %815 = vmatprep.subr.bf16.mxu0 0
    %816 = vmatpush1.bf16.xpose.msra.mxu0 0
    %817 = vmatprep.subr.bf16.mxu0 0
    %818 = vmatpush1.bf16.xpose.msra.mxu0 0
    %819 = vmatprep.subr.bf16.mxu0 0
    %820 = vmatpush1.bf16.xpose.msra.mxu0 0
    %821 = vmatprep.subr.bf16.mxu0 0
    %822 = vmatpush1.bf16.xpose.msra.mxu0 0
    %823 = vmatprep.subr.bf16.mxu0 0
    %824 = vmatpush1.bf16.xpose.msra.mxu0 0
    %825 = vmatprep.subr.bf16.mxu0 0
    %826 = vmatpush1.bf16.xpose.msra.mxu0 0
    %827 = vmatprep.subr.bf16.mxu0 0
    %828 = vmatpush1.bf16.xpose.msra.mxu0 0
    %829 = vmatprep.subr.bf16.mxu0 0
    %830 = vmatpush1.bf16.xpose.msra.mxu0 0
    %831 = vmatprep.mubr.bf16.mxu0 0
    %832 = vmatmul.mubr.bf16.gmra.mrb[0].mxu0 %v541
    %v833 = vpop.f32.mrb[0].mxu0
    %v834 = vadd.f32 0.0, %v833
    %v835 = vpop.f32.mrb[0].mxu0
    %v836 = vpop.f32.mrb[0].mxu0
    %v837 = vpop.f32.mrb[0].mxu0
    %838 = vdwg.mxu0
    %839 = vmatprep.subr.bf16.mxu0 0
    %840 = vmatpush1.bf16.xpose.msra.mxu0 %v550
    %841 = vmatprep.subr.bf16.mxu0 0
    %842 = vmatpush1.bf16.xpose.msra.mxu0 0
    %843 = vmatprep.subr.bf16.mxu0 0
    %844 = vmatpush1.bf16.xpose.msra.mxu0 0
    %845 = vmatprep.subr.bf16.mxu0 0
    %846 = vmatpush1.bf16.xpose.msra.mxu0 0
    %847 = vmatprep.subr.bf16.mxu0 0
    %848 = vmatpush1.bf16.xpose.msra.mxu0 0
    %849 = vmatprep.subr.bf16.mxu0 0
    %850 = vmatpush1.bf16.xpose.msra.mxu0 0
    %851 = vmatprep.subr.bf16.mxu0 0
    %852 = vmatpush1.bf16.xpose.msra.mxu0 0
    %853 = vmatprep.subr.bf16.mxu0 0
    %854 = vmatpush1.bf16.xpose.msra.mxu0 0
    %855 = vmatprep.subr.bf16.mxu0 0
    %856 = vmatpush1.bf16.xpose.msra.mxu0 0
    %857 = vmatprep.subr.bf16.mxu0 0
    %858 = vmatpush1.bf16.xpose.msra.mxu0 0
    %859 = vmatprep.subr.bf16.mxu0 0
    %860 = vmatpush1.bf16.xpose.msra.mxu0 0
    %861 = vmatprep.subr.bf16.mxu0 0
    %862 = vmatpush1.bf16.xpose.msra.mxu0 0
    %863 = vmatprep.subr.bf16.mxu0 0
    %864 = vmatpush1.bf16.xpose.msra.mxu0 0
    %865 = vmatprep.subr.bf16.mxu0 0
    %866 = vmatpush1.bf16.xpose.msra.mxu0 0
    %867 = vmatprep.subr.bf16.mxu0 0
    %868 = vmatpush1.bf16.xpose.msra.mxu0 0
    %869 = vmatprep.subr.bf16.mxu0 0
    %870 = vmatpush1.bf16.xpose.msra.mxu0 0
    %871 = vmatprep.mubr.bf16.mxu0 0
    %872 = vmatmul.mubr.bf16.gmra.mrb[0].mxu0 %v542
    %v873 = vpop.f32.mrb[0].mxu0
    %v874 = vadd.f32 0.0, %v873
    %v875 = vpop.f32.mrb[0].mxu0
    %v876 = vpop.f32.mrb[0].mxu0
    %v877 = vpop.f32.mrb[0].mxu0
    %878 = vdwg.mxu0
    %vm879 = vcmp.gt.s32.totalorder %v97, 0
    %v880 = vsel %vm879, 1, 0
    %v881 = vcombine.high %v880, %v880
    %v883 = vunpack.c.l.s4 1966171168
    %v884 = vunpack.c.0.s8 %v883
    %v885 = vlaneseq
    %v886 = vshrl.u32 %v885, 7
    %v887 = vsub.s32 %v884, %v886
    %v888 = vrot.slane %v880, %v887
    %v890 = vunpack.c.l.s4 1966171168
    %v891 = vunpack.c.0.s8 %v890
    %v892 = vlaneseq
    %v893 = vshrl.u32 %v892, 7
    %v894 = vsub.s32 %v891, %v893
    %v895 = vrot.slane %v881, %v894
    %v896 = vcombine.high %v888, %v888
    %v897 = vcombine.high %v895, %v895
    %v899 = vunpack.c.l.s4 1966171168
    %v900 = vunpack.c.0.s8 %v899
    %v901 = vlaneseq
    %v902 = vshrl.u32 %v901, 7
    %v903 = vsub.s32 %v900, %v902
    %v904 = vrot.slane %v888, %v903
    %v906 = vunpack.c.l.s4 1966171168
    %v907 = vunpack.c.0.s8 %v906
    %v908 = vlaneseq
    %v909 = vshrl.u32 %v908, 7
    %v910 = vsub.s32 %v907, %v909
    %v911 = vrot.slane %v895, %v910
    %v913 = vunpack.c.l.s4 1966171168
    %v914 = vunpack.c.0.s8 %v913
    %v915 = vlaneseq
    %v916 = vshrl.u32 %v915, 7
    %v917 = vsub.s32 %v914, %v916
    %v918 = vrot.slane %v896, %v917
    %v920 = vunpack.c.l.s4 1966171168
    %v921 = vunpack.c.0.s8 %v920
    %v922 = vlaneseq
    %v923 = vshrl.u32 %v922, 7
    %v924 = vsub.s32 %v921, %v923
    %v925 = vrot.slane %v897, %v924
    %v926 = vcombine.high %v904, %v904
    %v927 = vcombine.high %v911, %v911
    %v928 = vcombine.high %v918, %v918
    %v929 = vcombine.high %v925, %v925
    %vm930 = vcmp.ne.s32.totalorder %v904, 0
    %vm931 = vcmp.ne.s32.totalorder %v918, 0
    %vm932 = vcmp.ne.s32.totalorder %v926, 0
    %vm933 = vcmp.ne.s32.totalorder %v928, 0
    %vm934 = vcmp.ne.s32.totalorder %v911, 0
    %vm935 = vcmp.ne.s32.totalorder %v925, 0
    %vm936 = vcmp.ne.s32.totalorder %v927, 0
    %vm937 = vcmp.ne.s32.totalorder %v929, 0
    %v938 = vsel %vm930, 1, 0
    %v939 = vsel %vm931, 1, 0
    %v940 = vsel %vm932, 1, 0
    %v941 = vsel %vm933, 1, 0
    %v942 = vsel %vm934, 1, 0
    %v943 = vsel %vm935, 1, 0
    %v944 = vsel %vm936, 1, 0
    %v945 = vsel %vm937, 1, 0
    %v946 = vlaneseq
    %v947 = vshrl.u32 %v946, 7
    %v948 = vsub.s32 0, %v947
    %v949 = vrot.slane %v938, %v948
    %v950 = vlaneseq
    %v951 = vshrl.u32 %v950, 7
    %v952 = vsub.s32 0, %v951
    %v953 = vrot.slane %v939, %v952
    %v954 = vlaneseq
    %v955 = vshrl.u32 %v954, 7
    %v956 = vsub.s32 0, %v955
    %v957 = vrot.slane %v940, %v956
    %v958 = vlaneseq
    %v959 = vshrl.u32 %v958, 7
    %v960 = vsub.s32 0, %v959
    %v961 = vrot.slane %v941, %v960
    %v962 = vlaneseq
    %v963 = vshrl.u32 %v962, 7
    %v964 = vsub.s32 0, %v963
    %v965 = vrot.slane %v942, %v964
    %v966 = vlaneseq
    %v967 = vshrl.u32 %v966, 7
    %v968 = vsub.s32 0, %v967
    %v969 = vrot.slane %v943, %v968
    %v970 = vlaneseq
    %v971 = vshrl.u32 %v970, 7
    %v972 = vsub.s32 0, %v971
    %v973 = vrot.slane %v944, %v972
    %v974 = vlaneseq
    %v975 = vshrl.u32 %v974, 7
    %v976 = vsub.s32 0, %v975
    %v977 = vrot.slane %v945, %v976
    %vm978 = vcmp.eq.s32.totalorder %v949, 1
    %vm979 = vcmp.eq.s32.totalorder %v953, 1
    %vm980 = vcmp.eq.s32.totalorder %v957, 1
    %vm981 = vcmp.eq.s32.totalorder %v961, 1
    %vm982 = vcmp.eq.s32.totalorder %v965, 1
    %vm983 = vcmp.eq.s32.totalorder %v969, 1
    %vm984 = vcmp.eq.s32.totalorder %v973, 1
    %vm985 = vcmp.eq.s32.totalorder %v977, 1
    %v986 = vsel %vm978, %v594, -1e+09
    %v987 = vsel %vm979, %v634, -1e+09
    %v988 = vsel %vm980, %v674, -1e+09
    %v989 = vsel %vm981, %v714, -1e+09
    %v990 = vsel %vm982, %v754, -1e+09
    %v991 = vsel %vm983, %v794, -1e+09
    %v992 = vsel %vm984, %v834, -1e+09
    %v993 = vsel %vm985, %v874, -1e+09
    %vm994 = vcmask 64512
    %v995 = vsel %vm994, %v986, -inf
    %996 = vmax.xlane.f32.xlu0 %v995
    %v997 = vpop.xlane.xlu0 %996
    %v998 = vsel %vm994, %v987, -inf
    %999 = vmax.xlane.f32.xlu0 %v998
    %v1000 = vpop.xlane.xlu0 %999
    %v1001 = vsel %vm994, %v988, -inf
    %1002 = vmax.xlane.f32.xlu0 %v1001
    %v1003 = vpop.xlane.xlu0 %1002
    %v1004 = vsel %vm994, %v989, -inf
    %1005 = vmax.xlane.f32.xlu0 %v1004
    %v1006 = vpop.xlane.xlu0 %1005
    %v1007 = vsel %vm994, %v990, -inf
    %1008 = vmax.xlane.f32.xlu0 %v1007
    %v1009 = vpop.xlane.xlu0 %1008
    %v1010 = vsel %vm994, %v991, -inf
    %1011 = vmax.xlane.f32.xlu0 %v1010
    %v1012 = vpop.xlane.xlu0 %1011
    %v1013 = vsel %vm994, %v992, -inf
    %1014 = vmax.xlane.f32.xlu0 %v1013
    %v1015 = vpop.xlane.xlu0 %1014
    %v1016 = vsel %vm994, %v993, -inf
    %1017 = vmax.xlane.f32.xlu0 %v1016
    %v1018 = vpop.xlane.xlu0 %1017
    %v1019 = vsub.f32 %v986, %v997
    %v1020 = vsub.f32 %v987, %v1000
    %v1021 = vsub.f32 %v988, %v1003
    %v1022 = vsub.f32 %v989, %v1006
    %v1023 = vsub.f32 %v990, %v1009
    %v1024 = vsub.f32 %v991, %v1012
    %v1025 = vsub.f32 %v992, %v1015
    %v1026 = vsub.f32 %v993, %v1018
    %v1027 = vmul.f32 %v1019, 1.442695
    %v1028 = vpow.pop %v1027
    %v1029 = vmul.f32 %v1020, 1.442695
    %v1030 = vpow.pop %v1029
    %v1031 = vmul.f32 %v1021, 1.442695
    %v1032 = vpow.pop %v1031
    %v1033 = vmul.f32 %v1022, 1.442695
    %v1034 = vpow.pop %v1033
    %v1035 = vmul.f32 %v1023, 1.442695
    %v1036 = vpow.pop %v1035
    %v1037 = vmul.f32 %v1024, 1.442695
    %v1038 = vpow.pop %v1037
    %v1039 = vmul.f32 %v1025, 1.442695
    %v1040 = vpow.pop %v1039
    %v1041 = vmul.f32 %v1026, 1.442695
    %v1042 = vpow.pop %v1041
    %v1043 = vsel %vm994, %v1028, 0.0
    %1044 = vadd.xlane.f32.xlu0 %v1043
    %v1045 = vpop.xlane.xlu0 %1044
    %v1046 = vsel %vm994, %v1030, 0.0
    %1047 = vadd.xlane.f32.xlu0 %v1046
    %v1048 = vpop.xlane.xlu0 %1047
    %v1049 = vsel %vm994, %v1032, 0.0
    %1050 = vadd.xlane.f32.xlu0 %v1049
    %v1051 = vpop.xlane.xlu0 %1050
    %v1052 = vsel %vm994, %v1034, 0.0
    %1053 = vadd.xlane.f32.xlu0 %v1052
    %v1054 = vpop.xlane.xlu0 %1053
    %v1055 = vsel %vm994, %v1036, 0.0
    %1056 = vadd.xlane.f32.xlu0 %v1055
    %v1057 = vpop.xlane.xlu0 %1056
    %v1058 = vsel %vm994, %v1038, 0.0
    %1059 = vadd.xlane.f32.xlu0 %v1058
    %v1060 = vpop.xlane.xlu0 %1059
    %v1061 = vsel %vm994, %v1040, 0.0
    %1062 = vadd.xlane.f32.xlu0 %v1061
    %v1063 = vpop.xlane.xlu0 %1062
    %v1064 = vsel %vm994, %v1042, 0.0
    %1065 = vadd.xlane.f32.xlu0 %v1064
    %v1066 = vpop.xlane.xlu0 %1065
    %v1067 = vrcp.pop %v1045
    %v1068 = vrcp.pop %v1048
    %v1069 = vrcp.pop %v1051
    %v1070 = vrcp.pop %v1054
    %v1071 = vrcp.pop %v1057
    %v1072 = vrcp.pop %v1060
    %v1073 = vrcp.pop %v1063
    %v1074 = vrcp.pop %v1066
    %v1075 = vmul.f32 %v1028, %v1067
    %v1076 = vmul.f32 %v1030, %v1068
    %v1077 = vmul.f32 %v1032, %v1069
    %v1078 = vmul.f32 %v1034, %v1070
    %v1079 = vmul.f32 %v1036, %v1071
    %v1080 = vmul.f32 %v1038, %v1072
    %v1081 = vmul.f32 %v1040, %v1073
    %v1082 = vmul.f32 %v1042, %v1074
    %v1083 = vpack.c.bf16 %v1075, %v1075
    %v1084 = vpack.c.bf16 %v1076, %v1076
    %v1085 = vpack.c.bf16 %v1077, %v1077
    %v1086 = vpack.c.bf16 %v1078, %v1078
    %v1087 = vpack.c.bf16 %v1079, %v1079
    %v1088 = vpack.c.bf16 %v1080, %v1080
    %v1089 = vpack.c.bf16 %v1081, %v1081
    %v1090 = vpack.c.bf16 %v1082, %v1082
    %v1092 = vsel %vm994, %v1083, 0
    %vm1094 = vcmask 1043456
    %v1096 = vsel %vm1094, %v551, 0
    %1098 = vmatprep.subr.bf16.mxu0 0
    %1099 = vmatpush1.bf16.msra.mxu0 %v1096
    %1100 = vmatprep.subr.bf16.mxu0 0
    %1101 = vmatpush1.bf16.msra.mxu0 0
    %1102 = vmatprep.subr.bf16.mxu0 0
    %1103 = vmatpush1.bf16.msra.mxu0 0
    %1104 = vmatprep.subr.bf16.mxu0 0
    %1105 = vmatpush1.bf16.msra.mxu0 0
    %1106 = vmatprep.subr.bf16.mxu0 0
    %1107 = vmatpush1.bf16.msra.mxu0 0
    %1108 = vmatprep.subr.bf16.mxu0 0
    %1109 = vmatpush1.bf16.msra.mxu0 0
    %1110 = vmatprep.subr.bf16.mxu0 0
    %1111 = vmatpush1.bf16.msra.mxu0 0
    %1112 = vmatprep.subr.bf16.mxu0 0
    %1113 = vmatpush1.bf16.msra.mxu0 0
    %1114 = vmatprep.subr.bf16.mxu0 0
    %1115 = vmatpush1.bf16.msra.mxu0 0
    %1116 = vmatprep.subr.bf16.mxu0 0
    %1117 = vmatpush1.bf16.msra.mxu0 0
    %1118 = vmatprep.subr.bf16.mxu0 0
    %1119 = vmatpush1.bf16.msra.mxu0 0
    %1120 = vmatprep.subr.bf16.mxu0 0
    %1121 = vmatpush1.bf16.msra.mxu0 0
    %1122 = vmatprep.subr.bf16.mxu0 0
    %1123 = vmatpush1.bf16.msra.mxu0 0
    %1124 = vmatprep.subr.bf16.mxu0 0
    %1125 = vmatpush1.bf16.msra.mxu0 0
    %1126 = vmatprep.subr.bf16.mxu0 0
    %1127 = vmatpush1.bf16.msra.mxu0 0
    %1128 = vmatprep.subr.bf16.mxu0 0
    %1129 = vmatpush1.bf16.msra.mxu0 0
    %1130 = vmatprep.mubr.bf16.mxu0 0
    %1131 = vmatmul.mubr.bf16.gmra.mrb[0].mxu0 %v1092
    %v1132 = vpop.f32.mrb[0].mxu0
    %v1133 = vadd.f32 0.0, %v1132
    %v1134 = vpop.f32.mrb[0].mxu0
    %v1135 = vpop.f32.mrb[0].mxu0
    %v1136 = vpop.f32.mrb[0].mxu0
    %1137 = vdwg.mxu0
    %v1139 = vsel %vm994, %v1084, 0
    %v1142 = vsel %vm1094, %v552, 0
    %1144 = vmatprep.subr.bf16.mxu0 0
    %1145 = vmatpush1.bf16.msra.mxu0 %v1142
    %1146 = vmatprep.subr.bf16.mxu0 0
    %1147 = vmatpush1.bf16.msra.mxu0 0
    %1148 = vmatprep.subr.bf16.mxu0 0
    %1149 = vmatpush1.bf16.msra.mxu0 0
    %1150 = vmatprep.subr.bf16.mxu0 0
    %1151 = vmatpush1.bf16.msra.mxu0 0
    %1152 = vmatprep.subr.bf16.mxu0 0
    %1153 = vmatpush1.bf16.msra.mxu0 0
    %1154 = vmatprep.subr.bf16.mxu0 0
    %1155 = vmatpush1.bf16.msra.mxu0 0
    %1156 = vmatprep.subr.bf16.mxu0 0
    %1157 = vmatpush1.bf16.msra.mxu0 0
    %1158 = vmatprep.subr.bf16.mxu0 0
    %1159 = vmatpush1.bf16.msra.mxu0 0
    %1160 = vmatprep.subr.bf16.mxu0 0
    %1161 = vmatpush1.bf16.msra.mxu0 0
    %1162 = vmatprep.subr.bf16.mxu0 0
    %1163 = vmatpush1.bf16.msra.mxu0 0
    %1164 = vmatprep.subr.bf16.mxu0 0
    %1165 = vmatpush1.bf16.msra.mxu0 0
    %1166 = vmatprep.subr.bf16.mxu0 0
    %1167 = vmatpush1.bf16.msra.mxu0 0
    %1168 = vmatprep.subr.bf16.mxu0 0
    %1169 = vmatpush1.bf16.msra.mxu0 0
    %1170 = vmatprep.subr.bf16.mxu0 0
    %1171 = vmatpush1.bf16.msra.mxu0 0
    %1172 = vmatprep.subr.bf16.mxu0 0
    %1173 = vmatpush1.bf16.msra.mxu0 0
    %1174 = vmatprep.subr.bf16.mxu0 0
    %1175 = vmatpush1.bf16.msra.mxu0 0
    %1176 = vmatprep.mubr.bf16.mxu0 0
    %1177 = vmatmul.mubr.bf16.gmra.mrb[0].mxu0 %v1139
    %v1178 = vpop.f32.mrb[0].mxu0
    %v1179 = vadd.f32 0.0, %v1178
    %v1180 = vpop.f32.mrb[0].mxu0
    %v1181 = vpop.f32.mrb[0].mxu0
    %v1182 = vpop.f32.mrb[0].mxu0
    %1183 = vdwg.mxu0
    %v1185 = vsel %vm994, %v1085, 0
    %v1188 = vsel %vm1094, %v553, 0
    %1190 = vmatprep.subr.bf16.mxu0 0
    %1191 = vmatpush1.bf16.msra.mxu0 %v1188
    %1192 = vmatprep.subr.bf16.mxu0 0
    %1193 = vmatpush1.bf16.msra.mxu0 0
    %1194 = vmatprep.subr.bf16.mxu0 0
    %1195 = vmatpush1.bf16.msra.mxu0 0
    %1196 = vmatprep.subr.bf16.mxu0 0
    %1197 = vmatpush1.bf16.msra.mxu0 0
    %1198 = vmatprep.subr.bf16.mxu0 0
    %1199 = vmatpush1.bf16.msra.mxu0 0
    %1200 = vmatprep.subr.bf16.mxu0 0
    %1201 = vmatpush1.bf16.msra.mxu0 0
    %1202 = vmatprep.subr.bf16.mxu0 0
    %1203 = vmatpush1.bf16.msra.mxu0 0
    %1204 = vmatprep.subr.bf16.mxu0 0
    %1205 = vmatpush1.bf16.msra.mxu0 0
    %1206 = vmatprep.subr.bf16.mxu0 0
    %1207 = vmatpush1.bf16.msra.mxu0 0
    %1208 = vmatprep.subr.bf16.mxu0 0
    %1209 = vmatpush1.bf16.msra.mxu0 0
    %1210 = vmatprep.subr.bf16.mxu0 0
    %1211 = vmatpush1.bf16.msra.mxu0 0
    %1212 = vmatprep.subr.bf16.mxu0 0
    %1213 = vmatpush1.bf16.msra.mxu0 0
    %1214 = vmatprep.subr.bf16.mxu0 0
    %1215 = vmatpush1.bf16.msra.mxu0 0
    %1216 = vmatprep.subr.bf16.mxu0 0
    %1217 = vmatpush1.bf16.msra.mxu0 0
    %1218 = vmatprep.subr.bf16.mxu0 0
    %1219 = vmatpush1.bf16.msra.mxu0 0
    %1220 = vmatprep.subr.bf16.mxu0 0
    %1221 = vmatpush1.bf16.msra.mxu0 0
    %1222 = vmatprep.mubr.bf16.mxu0 0
    %1223 = vmatmul.mubr.bf16.gmra.mrb[0].mxu0 %v1185
    %v1224 = vpop.f32.mrb[0].mxu0
    %v1225 = vadd.f32 0.0, %v1224
    %v1226 = vpop.f32.mrb[0].mxu0
    %v1227 = vpop.f32.mrb[0].mxu0
    %v1228 = vpop.f32.mrb[0].mxu0
    %1229 = vdwg.mxu0
    %v1231 = vsel %vm994, %v1086, 0
    %v1234 = vsel %vm1094, %v554, 0
    %1236 = vmatprep.subr.bf16.mxu0 0
    %1237 = vmatpush1.bf16.msra.mxu0 %v1234
    %1238 = vmatprep.subr.bf16.mxu0 0
    %1239 = vmatpush1.bf16.msra.mxu0 0
    %1240 = vmatprep.subr.bf16.mxu0 0
    %1241 = vmatpush1.bf16.msra.mxu0 0
    %1242 = vmatprep.subr.bf16.mxu0 0
    %1243 = vmatpush1.bf16.msra.mxu0 0
    %1244 = vmatprep.subr.bf16.mxu0 0
    %1245 = vmatpush1.bf16.msra.mxu0 0
    %1246 = vmatprep.subr.bf16.mxu0 0
    %1247 = vmatpush1.bf16.msra.mxu0 0
    %1248 = vmatprep.subr.bf16.mxu0 0
    %1249 = vmatpush1.bf16.msra.mxu0 0
    %1250 = vmatprep.subr.bf16.mxu0 0
    %1251 = vmatpush1.bf16.msra.mxu0 0
    %1252 = vmatprep.subr.bf16.mxu0 0
    %1253 = vmatpush1.bf16.msra.mxu0 0
    %1254 = vmatprep.subr.bf16.mxu0 0
    %1255 = vmatpush1.bf16.msra.mxu0 0
    %1256 = vmatprep.subr.bf16.mxu0 0
    %1257 = vmatpush1.bf16.msra.mxu0 0
    %1258 = vmatprep.subr.bf16.mxu0 0
    %1259 = vmatpush1.bf16.msra.mxu0 0
    %1260 = vmatprep.subr.bf16.mxu0 0
    %1261 = vmatpush1.bf16.msra.mxu0 0
    %1262 = vmatprep.subr.bf16.mxu0 0
    %1263 = vmatpush1.bf16.msra.mxu0 0
    %1264 = vmatprep.subr.bf16.mxu0 0
    %1265 = vmatpush1.bf16.msra.mxu0 0
    %1266 = vmatprep.subr.bf16.mxu0 0
    %1267 = vmatpush1.bf16.msra.mxu0 0
    %1268 = vmatprep.mubr.bf16.mxu0 0
    %1269 = vmatmul.mubr.bf16.gmra.mrb[0].mxu0 %v1231
    %v1270 = vpop.f32.mrb[0].mxu0
    %v1271 = vadd.f32 0.0, %v1270
    %v1272 = vpop.f32.mrb[0].mxu0
    %v1273 = vpop.f32.mrb[0].mxu0
    %v1274 = vpop.f32.mrb[0].mxu0
    %1275 = vdwg.mxu0
    %v1277 = vsel %vm994, %v1087, 0
    %v1280 = vsel %vm1094, %v555, 0
    %1282 = vmatprep.subr.bf16.mxu0 0
    %1283 = vmatpush1.bf16.msra.mxu0 %v1280
    %1284 = vmatprep.subr.bf16.mxu0 0
    %1285 = vmatpush1.bf16.msra.mxu0 0
    %1286 = vmatprep.subr.bf16.mxu0 0
    %1287 = vmatpush1.bf16.msra.mxu0 0
    %1288 = vmatprep.subr.bf16.mxu0 0
    %1289 = vmatpush1.bf16.msra.mxu0 0
    %1290 = vmatprep.subr.bf16.mxu0 0
    %1291 = vmatpush1.bf16.msra.mxu0 0
    %1292 = vmatprep.subr.bf16.mxu0 0
    %1293 = vmatpush1.bf16.msra.mxu0 0
    %1294 = vmatprep.subr.bf16.mxu0 0
    %1295 = vmatpush1.bf16.msra.mxu0 0
    %1296 = vmatprep.subr.bf16.mxu0 0
    %1297 = vmatpush1.bf16.msra.mxu0 0
    %1298 = vmatprep.subr.bf16.mxu0 0
    %1299 = vmatpush1.bf16.msra.mxu0 0
    %1300 = vmatprep.subr.bf16.mxu0 0
    %1301 = vmatpush1.bf16.msra.mxu0 0
    %1302 = vmatprep.subr.bf16.mxu0 0
    %1303 = vmatpush1.bf16.msra.mxu0 0
    %1304 = vmatprep.subr.bf16.mxu0 0
    %1305 = vmatpush1.bf16.msra.mxu0 0
    %1306 = vmatprep.subr.bf16.mxu0 0
    %1307 = vmatpush1.bf16.msra.mxu0 0
    %1308 = vmatprep.subr.bf16.mxu0 0
    %1309 = vmatpush1.bf16.msra.mxu0 0
    %1310 = vmatprep.subr.bf16.mxu0 0
    %1311 = vmatpush1.bf16.msra.mxu0 0
    %1312 = vmatprep.subr.bf16.mxu0 0
    %1313 = vmatpush1.bf16.msra.mxu0 0
    %1314 = vmatprep.mubr.bf16.mxu0 0
    %1315 = vmatmul.mubr.bf16.gmra.mrb[0].mxu0 %v1277
    %v1316 = vpop.f32.mrb[0].mxu0
    %v1317 = vadd.f32 0.0, %v1316
    %v1318 = vpop.f32.mrb[0].mxu0
    %v1319 = vpop.f32.mrb[0].mxu0
    %v1320 = vpop.f32.mrb[0].mxu0
    %1321 = vdwg.mxu0
    %v1323 = vsel %vm994, %v1088, 0
    %v1326 = vsel %vm1094, %v556, 0
    %1328 = vmatprep.subr.bf16.mxu0 0
    %1329 = vmatpush1.bf16.msra.mxu0 %v1326
    %1330 = vmatprep.subr.bf16.mxu0 0
    %1331 = vmatpush1.bf16.msra.mxu0 0
    %1332 = vmatprep.subr.bf16.mxu0 0
    %1333 = vmatpush1.bf16.msra.mxu0 0
    %1334 = vmatprep.subr.bf16.mxu0 0
    %1335 = vmatpush1.bf16.msra.mxu0 0
    %1336 = vmatprep.subr.bf16.mxu0 0
    %1337 = vmatpush1.bf16.msra.mxu0 0
    %1338 = vmatprep.subr.bf16.mxu0 0
    %1339 = vmatpush1.bf16.msra.mxu0 0
    %1340 = vmatprep.subr.bf16.mxu0 0
    %1341 = vmatpush1.bf16.msra.mxu0 0
    %1342 = vmatprep.subr.bf16.mxu0 0
    %1343 = vmatpush1.bf16.msra.mxu0 0
    %1344 = vmatprep.subr.bf16.mxu0 0
    %1345 = vmatpush1.bf16.msra.mxu0 0
    %1346 = vmatprep.subr.bf16.mxu0 0
    %1347 = vmatpush1.bf16.msra.mxu0 0
    %1348 = vmatprep.subr.bf16.mxu0 0
    %1349 = vmatpush1.bf16.msra.mxu0 0
    %1350 = vmatprep.subr.bf16.mxu0 0
    %1351 = vmatpush1.bf16.msra.mxu0 0
    %1352 = vmatprep.subr.bf16.mxu0 0
    %1353 = vmatpush1.bf16.msra.mxu0 0
    %1354 = vmatprep.subr.bf16.mxu0 0
    %1355 = vmatpush1.bf16.msra.mxu0 0
    %1356 = vmatprep.subr.bf16.mxu0 0
    %1357 = vmatpush1.bf16.msra.mxu0 0
    %1358 = vmatprep.subr.bf16.mxu0 0
    %1359 = vmatpush1.bf16.msra.mxu0 0
    %1360 = vmatprep.mubr.bf16.mxu0 0
    %1361 = vmatmul.mubr.bf16.gmra.mrb[0].mxu0 %v1323
    %v1362 = vpop.f32.mrb[0].mxu0
    %v1363 = vadd.f32 0.0, %v1362
    %v1364 = vpop.f32.mrb[0].mxu0
    %v1365 = vpop.f32.mrb[0].mxu0
    %v1366 = vpop.f32.mrb[0].mxu0
    %1367 = vdwg.mxu0
    %v1369 = vsel %vm994, %v1089, 0
    %v1372 = vsel %vm1094, %v557, 0
    %1374 = vmatprep.subr.bf16.mxu0 0
    %1375 = vmatpush1.bf16.msra.mxu0 %v1372
    %1376 = vmatprep.subr.bf16.mxu0 0
    %1377 = vmatpush1.bf16.msra.mxu0 0
    %1378 = vmatprep.subr.bf16.mxu0 0
    %1379 = vmatpush1.bf16.msra.mxu0 0
    %1380 = vmatprep.subr.bf16.mxu0 0
    %1381 = vmatpush1.bf16.msra.mxu0 0
    %1382 = vmatprep.subr.bf16.mxu0 0
    %1383 = vmatpush1.bf16.msra.mxu0 0
    %1384 = vmatprep.subr.bf16.mxu0 0
    %1385 = vmatpush1.bf16.msra.mxu0 0
    %1386 = vmatprep.subr.bf16.mxu0 0
    %1387 = vmatpush1.bf16.msra.mxu0 0
    %1388 = vmatprep.subr.bf16.mxu0 0
    %1389 = vmatpush1.bf16.msra.mxu0 0
    %1390 = vmatprep.subr.bf16.mxu0 0
    %1391 = vmatpush1.bf16.msra.mxu0 0
    %1392 = vmatprep.subr.bf16.mxu0 0
    %1393 = vmatpush1.bf16.msra.mxu0 0
    %1394 = vmatprep.subr.bf16.mxu0 0
    %1395 = vmatpush1.bf16.msra.mxu0 0
    %1396 = vmatprep.subr.bf16.mxu0 0
    %1397 = vmatpush1.bf16.msra.mxu0 0
    %1398 = vmatprep.subr.bf16.mxu0 0
    %1399 = vmatpush1.bf16.msra.mxu0 0
    %1400 = vmatprep.subr.bf16.mxu0 0
    %1401 = vmatpush1.bf16.msra.mxu0 0
    %1402 = vmatprep.subr.bf16.mxu0 0
    %1403 = vmatpush1.bf16.msra.mxu0 0
    %1404 = vmatprep.subr.bf16.mxu0 0
    %1405 = vmatpush1.bf16.msra.mxu0 0
    %1406 = vmatprep.mubr.bf16.mxu0 0
    %1407 = vmatmul.mubr.bf16.gmra.mrb[0].mxu0 %v1369
    %v1408 = vpop.f32.mrb[0].mxu0
    %v1409 = vadd.f32 0.0, %v1408
    %v1410 = vpop.f32.mrb[0].mxu0
    %v1411 = vpop.f32.mrb[0].mxu0
    %v1412 = vpop.f32.mrb[0].mxu0
    %1413 = vdwg.mxu0
    %v1415 = vsel %vm994, %v1090, 0
    %v1418 = vsel %vm1094, %v558, 0
    %1420 = vmatprep.subr.bf16.mxu0 0
    %1421 = vmatpush1.bf16.msra.mxu0 %v1418
    %1422 = vmatprep.subr.bf16.mxu0 0
    %1423 = vmatpush1.bf16.msra.mxu0 0
    %1424 = vmatprep.subr.bf16.mxu0 0
    %1425 = vmatpush1.bf16.msra.mxu0 0
    %1426 = vmatprep.subr.bf16.mxu0 0
    %1427 = vmatpush1.bf16.msra.mxu0 0
    %1428 = vmatprep.subr.bf16.mxu0 0
    %1429 = vmatpush1.bf16.msra.mxu0 0
    %1430 = vmatprep.subr.bf16.mxu0 0
    %1431 = vmatpush1.bf16.msra.mxu0 0
    %1432 = vmatprep.subr.bf16.mxu0 0
    %1433 = vmatpush1.bf16.msra.mxu0 0
    %1434 = vmatprep.subr.bf16.mxu0 0
    %1435 = vmatpush1.bf16.msra.mxu0 0
    %1436 = vmatprep.subr.bf16.mxu0 0
    %1437 = vmatpush1.bf16.msra.mxu0 0
    %1438 = vmatprep.subr.bf16.mxu0 0
    %1439 = vmatpush1.bf16.msra.mxu0 0
    %1440 = vmatprep.subr.bf16.mxu0 0
    %1441 = vmatpush1.bf16.msra.mxu0 0
    %1442 = vmatprep.subr.bf16.mxu0 0
    %1443 = vmatpush1.bf16.msra.mxu0 0
    %1444 = vmatprep.subr.bf16.mxu0 0
    %1445 = vmatpush1.bf16.msra.mxu0 0
    %1446 = vmatprep.subr.bf16.mxu0 0
    %1447 = vmatpush1.bf16.msra.mxu0 0
    %1448 = vmatprep.subr.bf16.mxu0 0
    %1449 = vmatpush1.bf16.msra.mxu0 0
    %1450 = vmatprep.subr.bf16.mxu0 0
    %1451 = vmatpush1.bf16.msra.mxu0 0
    %1452 = vmatprep.mubr.bf16.mxu0 0
    %1453 = vmatmul.mubr.bf16.gmra.mrb[0].mxu0 %v1415
    %v1454 = vpop.f32.mrb[0].mxu0
    %v1455 = vadd.f32 0.0, %v1454
    %v1456 = vpop.f32.mrb[0].mxu0
    %v1457 = vpop.f32.mrb[0].mxu0
    %v1458 = vpop.f32.mrb[0].mxu0
    %1459 = vdwg.mxu0
    %v1460 = vunpack.c.l.bf16 %v237
    %v1461 = vunpack.c.l.bf16 %v238
    %v1462 = vunpack.c.l.bf16 %v239
    %v1463 = vunpack.c.l.bf16 %v240
    %v1464 = vunpack.c.l.bf16 %v241
    %v1465 = vunpack.c.l.bf16 %v242
    %v1466 = vunpack.c.l.bf16 %v243
    %v1467 = vunpack.c.l.bf16 %v244
    %v1468 = vadd.f32 %v1460, %v1133
    %v1469 = vadd.f32 %v1461, %v1179
    %v1470 = vadd.f32 %v1462, %v1225
    %v1471 = vadd.f32 %v1463, %v1271
    %v1472 = vadd.f32 %v1464, %v1317
    %v1473 = vadd.f32 %v1465, %v1363
    %v1474 = vadd.f32 %v1466, %v1409
    %v1475 = vadd.f32 %v1467, %v1455
    %v1476 = vpack.c.bf16 %v1469, %v1468
    %v1477 = vpack.c.bf16 %v1471, %v1470
    %v1478 = vpack.c.bf16 %v1473, %v1472
    %v1479 = vpack.c.bf16 %v1475, %v1474
    %v1481 = vlaneseq
    %v1482 = vshrl.u32 %v1481, 7
    %v1483 = vsub.s32 0, %v1482
    %v1484 = vrot.slane %v171, %v1483
    %v1485 = vlaneseq
    %v1486 = vshrl.u32 %v1485, 7
    %v1487 = vsub.s32 1, %v1486
    %v1488 = vrot.slane %v171, %v1487
    %v1489 = vlaneseq
    %v1490 = vshrl.u32 %v1489, 7
    %v1491 = vsub.s32 2, %v1490
    %v1492 = vrot.slane %v171, %v1491
    %v1493 = vlaneseq
    %v1494 = vshrl.u32 %v1493, 7
    %v1495 = vsub.s32 3, %v1494
    %v1496 = vrot.slane %v171, %v1495
    %v1533 = vunpack.c.l.b16 %v139
    %v1534 = vunpack.c.h.b16 %v139
    %v1535 = vunpack.c.l.b16 %v140
    %v1536 = vunpack.c.h.b16 %v140
    %v1537 = vunpack.c.l.b16 %v141
    %v1538 = vunpack.c.h.b16 %v141
    %v1539 = vunpack.c.l.b16 %v142
    %v1540 = vunpack.c.h.b16 %v142
    %v1541 = vunpack.c.l.b16 %v143
    %v1542 = vunpack.c.h.b16 %v143
    %v1543 = vunpack.c.l.b16 %v144
    %v1544 = vunpack.c.h.b16 %v144
    %v1545 = vunpack.c.l.b16 %v145
    %v1546 = vunpack.c.h.b16 %v145
    %v1547 = vunpack.c.l.b16 %v146
    %v1548 = vunpack.c.h.b16 %v146
    %v1549 = vunpack.c.l.b16 %v147
    %v1550 = vunpack.c.h.b16 %v147
    %v1551 = vunpack.c.l.b16 %v148
    %v1552 = vunpack.c.h.b16 %v148
    %v1553 = vunpack.c.l.b16 %v149
    %v1554 = vunpack.c.h.b16 %v149
    %v1555 = vunpack.c.l.b16 %v150
    %v1556 = vunpack.c.h.b16 %v150
    %v1557 = vunpack.c.l.b16 %v151
    %v1558 = vunpack.c.h.b16 %v151
    %v1559 = vunpack.c.l.b16 %v152
    %v1560 = vunpack.c.h.b16 %v152
    %v1561 = vunpack.c.l.b16 %v153
    %v1562 = vunpack.c.h.b16 %v153
    %v1563 = vunpack.c.l.b16 %v154
    %v1564 = vunpack.c.h.b16 %v154
    %v1565 = vunpack.c.l.b16 %v155
    %v1566 = vunpack.c.h.b16 %v155
    %v1567 = vunpack.c.l.b16 %v156
    %v1568 = vunpack.c.h.b16 %v156
    %v1569 = vunpack.c.l.b16 %v157
    %v1570 = vunpack.c.h.b16 %v157
    %v1571 = vunpack.c.l.b16 %v158
    %v1572 = vunpack.c.h.b16 %v158
    %v1573 = vunpack.c.l.b16 %v159
    %v1574 = vunpack.c.h.b16 %v159
    %v1575 = vunpack.c.l.b16 %v160
    %v1576 = vunpack.c.h.b16 %v160
    %v1577 = vunpack.c.l.b16 %v161
    %v1578 = vunpack.c.h.b16 %v161
    %v1579 = vunpack.c.l.b16 %v162
    %v1580 = vunpack.c.h.b16 %v162
    %v1581 = vunpack.c.l.b16 %v163
    %v1582 = vunpack.c.h.b16 %v163
    %v1583 = vunpack.c.l.b16 %v164
    %v1584 = vunpack.c.h.b16 %v164
    %v1585 = vunpack.c.l.b16 %v165
    %v1586 = vunpack.c.h.b16 %v165
    %v1587 = vunpack.c.l.b16 %v166
    %v1588 = vunpack.c.h.b16 %v166
    %v1589 = vunpack.c.l.b16 %v167
    %v1590 = vunpack.c.h.b16 %v167
    %v1591 = vunpack.c.l.b16 %v168
    %v1592 = vunpack.c.h.b16 %v168
    %v1593 = vunpack.c.l.b16 %v169
    %v1594 = vunpack.c.h.b16 %v169
    %v1595 = vunpack.c.l.b16 %v170
    %v1596 = vunpack.c.h.b16 %v170
    %v1597 = vpack.c.b16 %v1537, %v1533
    %v1598 = vpack.c.b16 %v1538, %v1534
    %v1599 = vpack.c.b16 %v1539, %v1535
    %v1600 = vpack.c.b16 %v1540, %v1536
    %v1601 = vpack.c.b16 %v1545, %v1541
    %v1602 = vpack.c.b16 %v1546, %v1542
    %v1603 = vpack.c.b16 %v1547, %v1543
    %v1604 = vpack.c.b16 %v1548, %v1544
    %v1605 = vpack.c.b16 %v1553, %v1549
    %v1606 = vpack.c.b16 %v1554, %v1550
    %v1607 = vpack.c.b16 %v1555, %v1551
    %v1608 = vpack.c.b16 %v1556, %v1552
    %v1609 = vpack.c.b16 %v1561, %v1557
    %v1610 = vpack.c.b16 %v1562, %v1558
    %v1611 = vpack.c.b16 %v1563, %v1559
    %v1612 = vpack.c.b16 %v1564, %v1560
    %v1613 = vpack.c.b16 %v1569, %v1565
    %v1614 = vpack.c.b16 %v1570, %v1566
    %v1615 = vpack.c.b16 %v1571, %v1567
    %v1616 = vpack.c.b16 %v1572, %v1568
    %v1617 = vpack.c.b16 %v1577, %v1573
    %v1618 = vpack.c.b16 %v1578, %v1574
    %v1619 = vpack.c.b16 %v1579, %v1575
    %v1620 = vpack.c.b16 %v1580, %v1576
    %v1621 = vpack.c.b16 %v1585, %v1581
    %v1622 = vpack.c.b16 %v1586, %v1582
    %v1623 = vpack.c.b16 %v1587, %v1583
    %v1624 = vpack.c.b16 %v1588, %v1584
    %v1625 = vpack.c.b16 %v1593, %v1589
    %v1626 = vpack.c.b16 %v1594, %v1590
    %v1627 = vpack.c.b16 %v1595, %v1591
    %v1628 = vpack.c.b16 %v1596, %v1592
    %1661 = vmatprep.subr.bf16.mxu0 %v1598
    %1662 = vmatpush1.bf16.msra.mxu0 %v1597
    %1663 = vmatprep.subr.bf16.mxu0 %v1602
    %1664 = vmatpush1.bf16.msra.mxu0 %v1601
    %1665 = vmatprep.subr.bf16.mxu0 %v1606
    %1666 = vmatpush1.bf16.msra.mxu0 %v1605
    %1667 = vmatprep.subr.bf16.mxu0 %v1610
    %1668 = vmatpush1.bf16.msra.mxu0 %v1609
    %1669 = vmatprep.subr.bf16.mxu0 %v1614
    %1670 = vmatpush1.bf16.msra.mxu0 %v1613
    %1671 = vmatprep.subr.bf16.mxu0 %v1618
    %1672 = vmatpush1.bf16.msra.mxu0 %v1617
    %1673 = vmatprep.subr.bf16.mxu0 %v1622
    %1674 = vmatpush1.bf16.msra.mxu0 %v1621
    %1675 = vmatprep.subr.bf16.mxu0 %v1626
    %1676 = vmatpush1.bf16.msra.mxu0 %v1625
    %1677 = vmatprep.subr.bf16.mxu0 0
    %1678 = vmatpush1.bf16.msra.mxu0 0
    %1679 = vmatprep.subr.bf16.mxu0 0
    %1680 = vmatpush1.bf16.msra.mxu0 0
    %1681 = vmatprep.subr.bf16.mxu0 0
    %1682 = vmatpush1.bf16.msra.mxu0 0
    %1683 = vmatprep.subr.bf16.mxu0 0
    %1684 = vmatpush1.bf16.msra.mxu0 0
    %1685 = vmatprep.subr.bf16.mxu0 0
    %1686 = vmatpush1.bf16.msra.mxu0 0
    %1687 = vmatprep.subr.bf16.mxu0 0
    %1688 = vmatpush1.bf16.msra.mxu0 0
    %1689 = vmatprep.subr.bf16.mxu0 0
    %1690 = vmatpush1.bf16.msra.mxu0 0
    %1691 = vmatprep.subr.bf16.mxu0 0
    %1692 = vmatpush1.bf16.msra.mxu0 0
    %1693 = vmatprep.mubr.bf16.mxu0 0
    %1694 = vmatmul.mubr.bf16.gmra.mrb[0].mxu0 %v1476
    %v1695 = vpop.f32.mrb[0].mxu0
    %v1696 = vadd.f32 %v1484, %v1695
    %v1697 = vpop.f32.mrb[0].mxu0
    %v1698 = vadd.f32 %v1488, %v1697
    %v1699 = vpop.f32.mrb[0].mxu0
    %v1700 = vadd.f32 %v1484, %v1699
    %v1701 = vpop.f32.mrb[0].mxu0
    %v1702 = vadd.f32 %v1488, %v1701
    %1703 = vmatprep.mubr.bf16.mxu0 0
    %1704 = vmatmul.mubr.bf16.gmra.mrb[0].mxu0 %v1477
    %v1705 = vpop.f32.mrb[0].mxu0
    %v1706 = vadd.f32 %v1484, %v1705
    %v1707 = vpop.f32.mrb[0].mxu0
    %v1708 = vadd.f32 %v1488, %v1707
    %v1709 = vpop.f32.mrb[0].mxu0
    %v1710 = vadd.f32 %v1484, %v1709
    %v1711 = vpop.f32.mrb[0].mxu0
    %v1712 = vadd.f32 %v1488, %v1711
    %1713 = vmatprep.mubr.bf16.mxu0 0
    %1714 = vmatmul.mubr.bf16.gmra.mrb[0].mxu0 %v1478
    %v1715 = vpop.f32.mrb[0].mxu0
    %v1716 = vadd.f32 %v1484, %v1715
    %v1717 = vpop.f32.mrb[0].mxu0
    %v1718 = vadd.f32 %v1488, %v1717
    %v1719 = vpop.f32.mrb[0].mxu0
    %v1720 = vadd.f32 %v1484, %v1719
    %v1721 = vpop.f32.mrb[0].mxu0
    %v1722 = vadd.f32 %v1488, %v1721
    %1723 = vmatprep.mubr.bf16.mxu0 0
    %1724 = vmatmul.mubr.bf16.gmra.mrb[0].mxu0 %v1479
    %v1725 = vpop.f32.mrb[0].mxu0
    %v1726 = vadd.f32 %v1484, %v1725
    %v1727 = vpop.f32.mrb[0].mxu0
    %v1728 = vadd.f32 %v1488, %v1727
    %v1729 = vpop.f32.mrb[0].mxu0
    %v1730 = vadd.f32 %v1484, %v1729
    %v1731 = vpop.f32.mrb[0].mxu0
    %v1732 = vadd.f32 %v1488, %v1731
    %1733 = vdwg.mxu0
    %1734 = vmatprep.subr.bf16.mxu0 %v1600
    %1735 = vmatpush1.bf16.msra.mxu0 %v1599
    %1736 = vmatprep.subr.bf16.mxu0 %v1604
    %1737 = vmatpush1.bf16.msra.mxu0 %v1603
    %1738 = vmatprep.subr.bf16.mxu0 %v1608
    %1739 = vmatpush1.bf16.msra.mxu0 %v1607
    %1740 = vmatprep.subr.bf16.mxu0 %v1612
    %1741 = vmatpush1.bf16.msra.mxu0 %v1611
    %1742 = vmatprep.subr.bf16.mxu0 %v1616
    %1743 = vmatpush1.bf16.msra.mxu0 %v1615
    %1744 = vmatprep.subr.bf16.mxu0 %v1620
    %1745 = vmatpush1.bf16.msra.mxu0 %v1619
    %1746 = vmatprep.subr.bf16.mxu0 %v1624
    %1747 = vmatpush1.bf16.msra.mxu0 %v1623
    %1748 = vmatprep.subr.bf16.mxu0 %v1628
    %1749 = vmatpush1.bf16.msra.mxu0 %v1627
    %1750 = vmatprep.subr.bf16.mxu0 0
    %1751 = vmatpush1.bf16.msra.mxu0 0
    %1752 = vmatprep.subr.bf16.mxu0 0
    %1753 = vmatpush1.bf16.msra.mxu0 0
    %1754 = vmatprep.subr.bf16.mxu0 0
    %1755 = vmatpush1.bf16.msra.mxu0 0
    %1756 = vmatprep.subr.bf16.mxu0 0
    %1757 = vmatpush1.bf16.msra.mxu0 0
    %1758 = vmatprep.subr.bf16.mxu0 0
    %1759 = vmatpush1.bf16.msra.mxu0 0
    %1760 = vmatprep.subr.bf16.mxu0 0
    %1761 = vmatpush1.bf16.msra.mxu0 0
    %1762 = vmatprep.subr.bf16.mxu0 0
    %1763 = vmatpush1.bf16.msra.mxu0 0
    %1764 = vmatprep.subr.bf16.mxu0 0
    %1765 = vmatpush1.bf16.msra.mxu0 0
    %1766 = vmatprep.mubr.bf16.mxu0 0
    %1767 = vmatmul.mubr.bf16.gmra.mrb[0].mxu0 %v1476
    %v1768 = vpop.f32.mrb[0].mxu0
    %v1769 = vadd.f32 %v1492, %v1768
    %v1770 = vpop.f32.mrb[0].mxu0
    %v1771 = vadd.f32 %v1496, %v1770
    %v1772 = vpop.f32.mrb[0].mxu0
    %v1773 = vadd.f32 %v1492, %v1772
    %v1774 = vpop.f32.mrb[0].mxu0
    %v1775 = vadd.f32 %v1496, %v1774
    %1776 = vmatprep.mubr.bf16.mxu0 0
    %1777 = vmatmul.mubr.bf16.gmra.mrb[0].mxu0 %v1477
    %v1778 = vpop.f32.mrb[0].mxu0
    %v1779 = vadd.f32 %v1492, %v1778
    %v1780 = vpop.f32.mrb[0].mxu0
    %v1781 = vadd.f32 %v1496, %v1780
    %v1782 = vpop.f32.mrb[0].mxu0
    %v1783 = vadd.f32 %v1492, %v1782
    %v1784 = vpop.f32.mrb[0].mxu0
    %v1785 = vadd.f32 %v1496, %v1784
    %1786 = vmatprep.mubr.bf16.mxu0 0
    %1787 = vmatmul.mubr.bf16.gmra.mrb[0].mxu0 %v1478
    %v1788 = vpop.f32.mrb[0].mxu0
    %v1789 = vadd.f32 %v1492, %v1788
    %v1790 = vpop.f32.mrb[0].mxu0
    %v1791 = vadd.f32 %v1496, %v1790
    %v1792 = vpop.f32.mrb[0].mxu0
    %v1793 = vadd.f32 %v1492, %v1792
    %v1794 = vpop.f32.mrb[0].mxu0
    %v1795 = vadd.f32 %v1496, %v1794
    %1796 = vmatprep.mubr.bf16.mxu0 0
    %1797 = vmatmul.mubr.bf16.gmra.mrb[0].mxu0 %v1479
    %v1798 = vpop.f32.mrb[0].mxu0
    %v1799 = vadd.f32 %v1492, %v1798
    %v1800 = vpop.f32.mrb[0].mxu0
    %v1801 = vadd.f32 %v1496, %v1800
    %v1802 = vpop.f32.mrb[0].mxu0
    %v1803 = vadd.f32 %v1492, %v1802
    %v1804 = vpop.f32.mrb[0].mxu0
    %v1805 = vadd.f32 %v1496, %v1804
    %1806 = vdwg.mxu0
    %v1807 = vmax.f32 %v1696, 0.0
    %v1808 = vmax.f32 %v1698, 0.0
    %v1809 = vmax.f32 %v1769, 0.0
    %v1810 = vmax.f32 %v1771, 0.0
    %v1811 = vmax.f32 %v1700, 0.0
    %v1812 = vmax.f32 %v1702, 0.0
    %v1813 = vmax.f32 %v1773, 0.0
    %v1814 = vmax.f32 %v1775, 0.0
    %v1815 = vmax.f32 %v1706, 0.0
    %v1816 = vmax.f32 %v1708, 0.0
    %v1817 = vmax.f32 %v1779, 0.0
    %v1818 = vmax.f32 %v1781, 0.0
    %v1819 = vmax.f32 %v1710, 0.0
    %v1820 = vmax.f32 %v1712, 0.0
    %v1821 = vmax.f32 %v1783, 0.0
    %v1822 = vmax.f32 %v1785, 0.0
    %v1823 = vmax.f32 %v1716, 0.0
    %v1824 = vmax.f32 %v1718, 0.0
    %v1825 = vmax.f32 %v1789, 0.0
    %v1826 = vmax.f32 %v1791, 0.0
    %v1827 = vmax.f32 %v1720, 0.0
    %v1828 = vmax.f32 %v1722, 0.0
    %v1829 = vmax.f32 %v1793, 0.0
    %v1830 = vmax.f32 %v1795, 0.0
    %v1831 = vmax.f32 %v1726, 0.0
    %v1832 = vmax.f32 %v1728, 0.0
    %v1833 = vmax.f32 %v1799, 0.0
    %v1834 = vmax.f32 %v1801, 0.0
    %v1835 = vmax.f32 %v1730, 0.0
    %v1836 = vmax.f32 %v1732, 0.0
    %v1837 = vmax.f32 %v1803, 0.0
    %v1838 = vmax.f32 %v1805, 0.0
    %v1839 = vpack.c.bf16 %v1811, %v1807
    %v1840 = vpack.c.bf16 %v1812, %v1808
    %v1841 = vpack.c.bf16 %v1813, %v1809
    %v1842 = vpack.c.bf16 %v1814, %v1810
    %v1843 = vpack.c.bf16 %v1819, %v1815
    %v1844 = vpack.c.bf16 %v1820, %v1816
    %v1845 = vpack.c.bf16 %v1821, %v1817
    %v1846 = vpack.c.bf16 %v1822, %v1818
    %v1847 = vpack.c.bf16 %v1827, %v1823
    %v1848 = vpack.c.bf16 %v1828, %v1824
    %v1849 = vpack.c.bf16 %v1829, %v1825
    %v1850 = vpack.c.bf16 %v1830, %v1826
    %v1851 = vpack.c.bf16 %v1835, %v1831
    %v1852 = vpack.c.bf16 %v1836, %v1832
    %v1853 = vpack.c.bf16 %v1837, %v1833
    %v1854 = vpack.c.bf16 %v1838, %v1834
    %v1856 = vlaneseq
    %v1857 = vshrl.u32 %v1856, 7
    %v1858 = vsub.s32 0, %v1857
    %v1859 = vrot.slane %v236, %v1858
    %v1925 = vunpack.c.l.b16 %v172
    %v1926 = vunpack.c.l.b16 %v173
    %v1927 = vunpack.c.l.b16 %v174
    %v1928 = vunpack.c.l.b16 %v175
    %v1929 = vunpack.c.l.b16 %v176
    %v1930 = vunpack.c.l.b16 %v177
    %v1931 = vunpack.c.l.b16 %v178
    %v1932 = vunpack.c.l.b16 %v179
    %v1933 = vunpack.c.l.b16 %v180
    %v1934 = vunpack.c.l.b16 %v181
    %v1935 = vunpack.c.l.b16 %v182
    %v1936 = vunpack.c.l.b16 %v183
    %v1937 = vunpack.c.l.b16 %v184
    %v1938 = vunpack.c.l.b16 %v185
    %v1939 = vunpack.c.l.b16 %v186
    %v1940 = vunpack.c.l.b16 %v187
    %v1941 = vunpack.c.l.b16 %v188
    %v1942 = vunpack.c.l.b16 %v189
    %v1943 = vunpack.c.l.b16 %v190
    %v1944 = vunpack.c.l.b16 %v191
    %v1945 = vunpack.c.l.b16 %v192
    %v1946 = vunpack.c.l.b16 %v193
    %v1947 = vunpack.c.l.b16 %v194
    %v1948 = vunpack.c.l.b16 %v195
    %v1949 = vunpack.c.l.b16 %v196
    %v1950 = vunpack.c.l.b16 %v197
    %v1951 = vunpack.c.l.b16 %v198
    %v1952 = vunpack.c.l.b16 %v199
    %v1953 = vunpack.c.l.b16 %v200
    %v1954 = vunpack.c.l.b16 %v201
    %v1955 = vunpack.c.l.b16 %v202
    %v1956 = vunpack.c.l.b16 %v203
    %v1957 = vunpack.c.l.b16 %v204
    %v1958 = vunpack.c.l.b16 %v205
    %v1959 = vunpack.c.l.b16 %v206
    %v1960 = vunpack.c.l.b16 %v207
    %v1961 = vunpack.c.l.b16 %v208
    %v1962 = vunpack.c.l.b16 %v209
    %v1963 = vunpack.c.l.b16 %v210
    %v1964 = vunpack.c.l.b16 %v211
    %v1965 = vunpack.c.l.b16 %v212
    %v1966 = vunpack.c.l.b16 %v213
    %v1967 = vunpack.c.l.b16 %v214
    %v1968 = vunpack.c.l.b16 %v215
    %v1969 = vunpack.c.l.b16 %v216
    %v1970 = vunpack.c.l.b16 %v217
    %v1971 = vunpack.c.l.b16 %v218
    %v1972 = vunpack.c.l.b16 %v219
    %v1973 = vunpack.c.l.b16 %v220
    %v1974 = vunpack.c.l.b16 %v221
    %v1975 = vunpack.c.l.b16 %v222
    %v1976 = vunpack.c.l.b16 %v223
    %v1977 = vunpack.c.l.b16 %v224
    %v1978 = vunpack.c.l.b16 %v225
    %v1979 = vunpack.c.l.b16 %v226
    %v1980 = vunpack.c.l.b16 %v227
    %v1981 = vunpack.c.l.b16 %v228
    %v1982 = vunpack.c.l.b16 %v229
    %v1983 = vunpack.c.l.b16 %v230
    %v1984 = vunpack.c.l.b16 %v231
    %v1985 = vunpack.c.l.b16 %v232
    %v1986 = vunpack.c.l.b16 %v233
    %v1987 = vunpack.c.l.b16 %v234
    %v1988 = vunpack.c.l.b16 %v235
    %v1989 = vpack.c.b16 %v1926, %v1925
    %v1990 = vpack.c.b16 %v1928, %v1927
    %v1991 = vpack.c.b16 %v1930, %v1929
    %v1992 = vpack.c.b16 %v1932, %v1931
    %v1993 = vpack.c.b16 %v1934, %v1933
    %v1994 = vpack.c.b16 %v1936, %v1935
    %v1995 = vpack.c.b16 %v1938, %v1937
    %v1996 = vpack.c.b16 %v1940, %v1939
    %v1997 = vpack.c.b16 %v1942, %v1941
    %v1998 = vpack.c.b16 %v1944, %v1943
    %v1999 = vpack.c.b16 %v1946, %v1945
    %v2000 = vpack.c.b16 %v1948, %v1947
    %v2001 = vpack.c.b16 %v1950, %v1949
    %v2002 = vpack.c.b16 %v1952, %v1951
    %v2003 = vpack.c.b16 %v1954, %v1953
    %v2004 = vpack.c.b16 %v1956, %v1955
    %v2005 = vpack.c.b16 %v1958, %v1957
    %v2006 = vpack.c.b16 %v1960, %v1959
    %v2007 = vpack.c.b16 %v1962, %v1961
    %v2008 = vpack.c.b16 %v1964, %v1963
    %v2009 = vpack.c.b16 %v1966, %v1965
    %v2010 = vpack.c.b16 %v1968, %v1967
    %v2011 = vpack.c.b16 %v1970, %v1969
    %v2012 = vpack.c.b16 %v1972, %v1971
    %v2013 = vpack.c.b16 %v1974, %v1973
    %v2014 = vpack.c.b16 %v1976, %v1975
    %v2015 = vpack.c.b16 %v1978, %v1977
    %v2016 = vpack.c.b16 %v1980, %v1979
    %v2017 = vpack.c.b16 %v1982, %v1981
    %v2018 = vpack.c.b16 %v1984, %v1983
    %v2019 = vpack.c.b16 %v1986, %v1985
    %v2020 = vpack.c.b16 %v1988, %v1987
    %2053 = vmatprep.subr.bf16.mxu0 0
    %2054 = vmatpush1.bf16.msra.mxu0 %v1989
    %2055 = vmatprep.subr.bf16.mxu0 0
    %2056 = vmatpush1.bf16.msra.mxu0 %v1990
    %2057 = vmatprep.subr.bf16.mxu0 0
    %2058 = vmatpush1.bf16.msra.mxu0 %v1991
    %2059 = vmatprep.subr.bf16.mxu0 0
    %2060 = vmatpush1.bf16.msra.mxu0 %v1992
    %2061 = vmatprep.subr.bf16.mxu0 0
    %2062 = vmatpush1.bf16.msra.mxu0 %v1993
    %2063 = vmatprep.subr.bf16.mxu0 0
    %2064 = vmatpush1.bf16.msra.mxu0 %v1994
    %2065 = vmatprep.subr.bf16.mxu0 0
    %2066 = vmatpush1.bf16.msra.mxu0 %v1995
    %2067 = vmatprep.subr.bf16.mxu0 0
    %2068 = vmatpush1.bf16.msra.mxu0 %v1996
    %2069 = vmatprep.subr.bf16.mxu0 0
    %2070 = vmatpush1.bf16.msra.mxu0 %v1997
    %2071 = vmatprep.subr.bf16.mxu0 0
    %2072 = vmatpush1.bf16.msra.mxu0 %v1998
    %2073 = vmatprep.subr.bf16.mxu0 0
    %2074 = vmatpush1.bf16.msra.mxu0 %v1999
    %2075 = vmatprep.subr.bf16.mxu0 0
    %2076 = vmatpush1.bf16.msra.mxu0 %v2000
    %2077 = vmatprep.subr.bf16.mxu0 0
    %2078 = vmatpush1.bf16.msra.mxu0 %v2001
    %2079 = vmatprep.subr.bf16.mxu0 0
    %2080 = vmatpush1.bf16.msra.mxu0 %v2002
    %2081 = vmatprep.subr.bf16.mxu0 0
    %2082 = vmatpush1.bf16.msra.mxu0 %v2003
    %2083 = vmatprep.subr.bf16.mxu0 0
    %2084 = vmatpush1.bf16.msra.mxu0 %v2004
    %2085 = vmatprep.mubr.bf16.mxu0 %v1840
    %2086 = vmatmul.mubr.bf16.gmra.mrb[0].mxu0 %v1839
    %v2087 = vpop.f32.mrb[0].mxu0
    %v2088 = vadd.f32 %v1859, %v2087
    %v2089 = vpop.f32.mrb[0].mxu0
    %v2090 = vpop.f32.mrb[0].mxu0
    %v2091 = vadd.f32 %v1859, %v2090
    %v2092 = vpop.f32.mrb[0].mxu0
    %2093 = vmatprep.mubr.bf16.mxu0 %v1844
    %2094 = vmatmul.mubr.bf16.gmra.mrb[0].mxu0 %v1843
    %v2095 = vpop.f32.mrb[0].mxu0
    %v2096 = vadd.f32 %v1859, %v2095
    %v2097 = vpop.f32.mrb[0].mxu0
    %v2098 = vpop.f32.mrb[0].mxu0
    %v2099 = vadd.f32 %v1859, %v2098
    %v2100 = vpop.f32.mrb[0].mxu0
    %2101 = vmatprep.mubr.bf16.mxu0 %v1848
    %2102 = vmatmul.mubr.bf16.gmra.mrb[0].mxu0 %v1847
    %v2103 = vpop.f32.mrb[0].mxu0
    %v2104 = vadd.f32 %v1859, %v2103
    %v2105 = vpop.f32.mrb[0].mxu0
    %v2106 = vpop.f32.mrb[0].mxu0
    %v2107 = vadd.f32 %v1859, %v2106
    %v2108 = vpop.f32.mrb[0].mxu0
    %2109 = vmatprep.mubr.bf16.mxu0 %v1852
    %2110 = vmatmul.mubr.bf16.gmra.mrb[0].mxu0 %v1851
    %v2111 = vpop.f32.mrb[0].mxu0
    %v2112 = vadd.f32 %v1859, %v2111
    %v2113 = vpop.f32.mrb[0].mxu0
    %v2114 = vpop.f32.mrb[0].mxu0
    %v2115 = vadd.f32 %v1859, %v2114
    %v2116 = vpop.f32.mrb[0].mxu0
    %2117 = vdwg.mxu0
    %2118 = vmatprep.subr.bf16.mxu0 0
    %2119 = vmatpush1.bf16.msra.mxu0 %v2005
    %2120 = vmatprep.subr.bf16.mxu0 0
    %2121 = vmatpush1.bf16.msra.mxu0 %v2006
    %2122 = vmatprep.subr.bf16.mxu0 0
    %2123 = vmatpush1.bf16.msra.mxu0 %v2007
    %2124 = vmatprep.subr.bf16.mxu0 0
    %2125 = vmatpush1.bf16.msra.mxu0 %v2008
    %2126 = vmatprep.subr.bf16.mxu0 0
    %2127 = vmatpush1.bf16.msra.mxu0 %v2009
    %2128 = vmatprep.subr.bf16.mxu0 0
    %2129 = vmatpush1.bf16.msra.mxu0 %v2010
    %2130 = vmatprep.subr.bf16.mxu0 0
    %2131 = vmatpush1.bf16.msra.mxu0 %v2011
    %2132 = vmatprep.subr.bf16.mxu0 0
    %2133 = vmatpush1.bf16.msra.mxu0 %v2012
    %2134 = vmatprep.subr.bf16.mxu0 0
    %2135 = vmatpush1.bf16.msra.mxu0 %v2013
    %2136 = vmatprep.subr.bf16.mxu0 0
    %2137 = vmatpush1.bf16.msra.mxu0 %v2014
    %2138 = vmatprep.subr.bf16.mxu0 0
    %2139 = vmatpush1.bf16.msra.mxu0 %v2015
    %2140 = vmatprep.subr.bf16.mxu0 0
    %2141 = vmatpush1.bf16.msra.mxu0 %v2016
    %2142 = vmatprep.subr.bf16.mxu0 0
    %2143 = vmatpush1.bf16.msra.mxu0 %v2017
    %2144 = vmatprep.subr.bf16.mxu0 0
    %2145 = vmatpush1.bf16.msra.mxu0 %v2018
    %2146 = vmatprep.subr.bf16.mxu0 0
    %2147 = vmatpush1.bf16.msra.mxu0 %v2019
    %2148 = vmatprep.subr.bf16.mxu0 0
    %2149 = vmatpush1.bf16.msra.mxu0 %v2020
    %2150 = vmatprep.mubr.bf16.mxu0 %v1842
    %2151 = vmatmul.mubr.bf16.gmra.mrb[0].mxu0 %v1841
    %v2152 = vpop.f32.mrb[0].mxu0
    %v2153 = vadd.f32 %v2088, %v2152
    %v2154 = vpop.f32.mrb[0].mxu0
    %v2155 = vpop.f32.mrb[0].mxu0
    %v2156 = vadd.f32 %v2091, %v2155
    %v2157 = vpop.f32.mrb[0].mxu0
    %2158 = vmatprep.mubr.bf16.mxu0 %v1846
    %2159 = vmatmul.mubr.bf16.gmra.mrb[0].mxu0 %v1845
    %v2160 = vpop.f32.mrb[0].mxu0
    %v2161 = vadd.f32 %v2096, %v2160
    %v2162 = vpop.f32.mrb[0].mxu0
    %v2163 = vpop.f32.mrb[0].mxu0
    %v2164 = vadd.f32 %v2099, %v2163
    %v2165 = vpop.f32.mrb[0].mxu0
    %2166 = vmatprep.mubr.bf16.mxu0 %v1850
    %2167 = vmatmul.mubr.bf16.gmra.mrb[0].mxu0 %v1849
    %v2168 = vpop.f32.mrb[0].mxu0
    %v2169 = vadd.f32 %v2104, %v2168
    %v2170 = vpop.f32.mrb[0].mxu0
    %v2171 = vpop.f32.mrb[0].mxu0
    %v2172 = vadd.f32 %v2107, %v2171
    %v2173 = vpop.f32.mrb[0].mxu0
    %2174 = vmatprep.mubr.bf16.mxu0 %v1854
    %2175 = vmatmul.mubr.bf16.gmra.mrb[0].mxu0 %v1853
    %v2176 = vpop.f32.mrb[0].mxu0
    %v2177 = vadd.f32 %v2112, %v2176
    %v2178 = vpop.f32.mrb[0].mxu0
    %v2179 = vpop.f32.mrb[0].mxu0
    %v2180 = vadd.f32 %v2115, %v2179
    %v2181 = vpop.f32.mrb[0].mxu0
    %2182 = vdwg.mxu0
    %v2183 = vadd.f32 %v1468, %v2153
    %v2184 = vadd.f32 %v1469, %v2156
    %v2185 = vadd.f32 %v1470, %v2161
    %v2186 = vadd.f32 %v1471, %v2164
    %v2187 = vadd.f32 %v1472, %v2169
    %v2188 = vadd.f32 %v1473, %v2172
    %v2189 = vadd.f32 %v1474, %v2177
    %v2190 = vadd.f32 %v1475, %v2180
    %v2191 = vpack.c.bf16 %v2183, %v2183
    %v2192 = vpack.c.bf16 %v2184, %v2184
    %v2193 = vpack.c.bf16 %v2185, %v2185
    %v2194 = vpack.c.bf16 %v2186, %v2186
    %v2195 = vpack.c.bf16 %v2187, %v2187
    %v2196 = vpack.c.bf16 %v2188, %v2188
    %v2197 = vpack.c.bf16 %v2189, %v2189
    %v2198 = vpack.c.bf16 %v2190, %v2190
    %2199 = vst [vmem:[#allocation11] sm:$0xf] %v2191
    %2200 = vst [vmem:[#allocation11 + $0x4] sm:$0xf] %v2192
    %2201 = vst [vmem:[#allocation11 + $0x8] sm:$0xf] %v2193
    %2202 = vst [vmem:[#allocation11 + $0xc] sm:$0xf] %v2194
    %2203 = vst [vmem:[#allocation11 + $0x10] sm:$0xf] %v2195
    %2204 = vst [vmem:[#allocation11 + $0x14] sm:$0xf] %v2196
    %2205 = vst [vmem:[#allocation11 + $0x18] sm:$0xf] %v2197
    %2206 = vst [vmem:[#allocation11 + $0x1c] sm:$0xf] %v2198
    // Predicated region
    $region54: #{tpu_custom_call.1} parent=1 // pred_check
      _
    $region55: #{tpu_custom_call.1} parent=1 // pred_check_branch
      %2208 = sbr.rel (0) target = $region57
    $region56: #{tpu_custom_call.1} parent=1 // pred_region
      %s2210 = ssub.s32 512, 512
      %2211 = vsyncadd [#allocation4], %s2210
      %s2212 = sshll.u32 [#allocation11], 4
      %s2213 = int_to_ptr.vmem [resolvable:$true] %s2212
      %2218 = dma.vmem_to_hbm [thread:$0]  %s2213, 512, %s8, [#allocation4], 64, 64, 4
    $region57: #{tpu_custom_call.1} parent=1 // pred_fallthru
      _
    // Predicated region
    $region58: #{tpu_custom_call.1} parent=1 // pred_check
      _
    $region59: #{tpu_custom_call.1} parent=1 // pred_check_branch
      %2220 = sbr.rel (0) target = $region61
    $region60: #{tpu_custom_call.1} parent=1 // pred_region
      %2221 = dma.done [#allocation4], 512
    $region61: #{tpu_custom_call.1} parent=1 // pred_fallthru
      _
    %2222 = vsyncpa [#allocation3], 1
    %2223 = vsyncpa [#allocation6], 1
    %2224 = vsyncpa [#allocation9], 1
    %2225 = vsyncpa [#allocation4], 1

</llo_original>
